<compile_context>
chip_gen: v7x
topology: tpu7x:2x2x1
jax: 0.10.0
libtpu: 0.0.40
codegen_flags: <defaults>
</compile_context>

<pallas_src>
import functools

import jax
import jax.numpy as jnp
from jax.experimental import pallas as pl
from jax.experimental.pallas import tpu as pltpu


def _mish_ref(z):
    # faithful PyTorch Mish (used in the wrapper / reference)
    return z * jnp.tanh(jax.nn.softplus(z))


def _mish_fast(z):
    # mish(x) = x * tanh(softplus(x)) = x * ((1+e^x)^2 - 1) / ((1+e^x)^2 + 1)
    # -> one EUP exp + one approx reciprocal instead of exp + log + tanh.
    zc = jnp.minimum(z, 20.0)                      # overflow guard for exp
    e = jnp.exp(zc)
    n2 = (1.0 + e) * (1.0 + e)
    y = z * (n2 - 1.0) * pl.reciprocal(n2 + 1.0, approx=True)
    return jnp.where(z > 20.0, z, y)


def _film_resblock_kernel(*refs, T, K, n_groups, use_res_conv, eps, mm_dtype):
    if use_res_conv:
        (x_ref, sc_ref, bi_ref, w0_ref, w1_ref, cols_ref, grp_ref,
         gtg0_ref, gtg1_ref, seg_ref, segt_ref, wr_ref, o_ref) = refs
    else:
        (x_ref, sc_ref, bi_ref, w0_ref, w1_ref, cols_ref, grp_ref,
         gtg0_ref, gtg1_ref, seg_ref, segt_ref, o_ref) = refs
        wr_ref = None

    f32 = jnp.float32
    C_out = o_ref.shape[0]
    BT = x_ref.shape[1]                             # chunk * T lanes
    pad = (K - 1) // 2
    inv_n = 1.0 / float((C_out // n_groups) * T)

    x_f32 = x_ref[...].astype(f32)                  # (C_in, BT)
    seg = seg_ref[...]                              # (BT, SP)  lane -> sample one-hot
    seg_t = segt_ref[...]                           # (SP, BT)
    grp = grp_ref[...]                              # (G, C_out) channel -> group one-hot
    cols = cols_ref[...]                            # (C_out, 4|5): [b0, beta0, b1, beta1, (br)]
    b0, beta0 = cols[:, 0:1], cols[:, 1:2]
    b1, beta1 = cols[:, 2:3], cols[:, 3:4]

    # position-within-sample along the lane axis (tiny; one iota + mod)
    t_idx = jax.lax.broadcasted_iota(jnp.int32, (1, BT), 1) % T

    def conv1d(z_f32, w_ref):
        # zero-padded 'same' conv as K rolled taps (XLU) + edge mask; the conv
        # bias is NOT added here — it is folded into the GroupNorm affine.
        acc = jnp.zeros((w_ref.shape[1], BT), f32)
        for k in range(K):
            d = k - pad
            if d == 0:
                tap = z_f32
            else:
                rolled = pltpu.roll(z_f32, shift=(-d) % BT, axis=1)
                valid = jnp.logical_and(t_idx + d >= 0, t_idx + d < T)
                tap = jnp.where(valid, rolled, 0.0)
            acc = acc + jnp.dot(w_ref[k], tap.astype(mm_dtype),
                                preferred_element_type=f32)
        return acc

    def group_norm(y_raw, b_col, gtg, beta_col):
        # single-pass stats: per-(channel, sample) sums of y and y^2 with one
        # independent pair of reduction matmuls; conv bias folded in at the
        # small (C, SP) level; gamma pre-folded into gtg; broadcast back with
        # a single fused y*a + off slab pass.
        s1 = jnp.dot(y_raw, seg, preferred_element_type=f32)               # (C, SP)
        s2 = jnp.dot(y_raw * y_raw, seg, preferred_element_type=f32)       # (C, SP)
        s1b = s1 + float(T) * b_col
        s2b = s2 + 2.0 * b_col * s1 + float(T) * (b_col * b_col)
        mean_gb = jnp.dot(grp, s1b, preferred_element_type=f32) * inv_n    # (G, SP)
        ey2_gb = jnp.dot(grp, s2b, preferred_element_type=f32) * inv_n
        var_gb = jnp.maximum(ey2_gb - mean_gb * mean_gb, 0.0)
        inv_gb = jax.lax.rsqrt(var_gb + eps)
        a_cb = jnp.dot(gtg, inv_gb, preferred_element_type=f32)            # gamma*inv (C, SP)
        off_cb = (beta_col + b_col * a_cb
                  - jnp.dot(gtg, mean_gb * inv_gb, preferred_element_type=f32))
        a_slab = jnp.dot(a_cb, seg_t, preferred_element_type=f32)          # (C, BT)
        off_slab = jnp.dot(off_cb, seg_t, preferred_element_type=f32)
        return y_raw * a_slab + off_slab

    # --- block 0: Conv1d -> GroupNorm -> Mish -------------------------------
    h = _mish_fast(group_norm(conv1d(x_f32, w0_ref), b0, gtg0_ref[...], beta0))

    # --- FiLM: compact per-sample scale/bias, lane-broadcast via seg_t ------
    sc_slab = jnp.dot(sc_ref[...].astype(f32), seg_t, preferred_element_type=f32)
    bi_slab = jnp.dot(bi_ref[...].astype(f32), seg_t, preferred_element_type=f32)
    h = sc_slab * h + bi_slab

    # --- block 1: Conv1d -> GroupNorm -> Mish -------------------------------
    h = _mish_fast(group_norm(conv1d(h, w1_ref), b1, gtg1_ref[...], beta1))

    # --- residual (1x1 conv only when in_ch != out_ch) ----------------------
    if use_res_conv:
        res = jnp.dot(wr_ref[...], x_f32.astype(mm_dtype),
                      preferred_element_type=f32) + cols[:, 4:5]
    else:
        res = x_f32
    o_ref[...] = (h + res).astype(o_ref.dtype)


# --------------------------- chunking / budgets -------------------------------
def _tpu_vmem_capacity_bytes():
    try:
        cap = int(pltpu.get_tpu_info().vmem_capacity_bytes)
        if cap > 0:
            return cap
    except Exception:
        pass
    return 64 << 20                                 # conservative (v7x-sized) fallback


def _default_min_chunks():
    # v7x has 2 TensorCores/chip: ask for >= 2 "parallel" grid steps so the
    # batch-chunk axis can actually shard across them.
    try:
        kind = jax.devices()[0].device_kind.lower()
        if "v7" in kind:
            return 2
    except Exception:
        pass
    return 1


def _block_bytes(c, T, C_in, C_out, K):
    """Rough per-grid-step VMEM footprint (bytes) for batch-chunk size c."""
    bt = c * T
    sp = max(c, 128)                                # padded sample axis when split
    io = 8 * bt * (C_in + C_out)                    # x / out slabs (f32, double-buffered)
    film = 16 * C_out * sp                          # FiLM scale/bias blocks (double-buffered)
    seg = 16 * bt * sp                              # seg + seg_t one-hot residents
    wts = 8 * K * C_out * (C_in + C_out) + 8 * C_out * (C_in + 16)
    live = 4 * bt * (2 * max(C_in, C_out) + 6 * C_out)  # taps/acc/affine/FiLM/residual slabs
    return io + film + seg + wts + live


def _pick_batch_chunk(B, T, C_in, C_out, K, budget_bytes, min_chunks):
    """Largest batch chunk that keeps blocks legal & lane-dense (128-multiple
    lanes whenever the grid is split), fits the VMEM budget, and gives
    >= min_chunks grid steps when possible."""
    min_chunks = max(1, min(min_chunks, B))
    n_steps = lambda c: -(-B // c)
    legal = lambda c: n_steps(c) == 1 or (c * T) % 128 == 0
    legal_cs = [c for c in range(B, 0, -1) if legal(c)]
    for want in (min_chunks, 1):
        good = [c for c in legal_cs
                if n_steps(c) >= want
                and _block_bytes(c, T, C_in, C_out, K) <= budget_bytes]
        if good:
            good.sort(key=lambda c: (n_steps(c) * c - B, -c))  # least padding, then biggest
            return good[0]
    return B                       # nothing fits: whole batch, blocks == full arrays


# ------------------------------- wrapper --------------------------------------
def film_resblock(x, cond, params, *, n_groups=1, mm_dtype=jnp.bfloat16,
                  eps=1e-5, min_batch_chunks=None, vmem_limit_bytes=None):
    B, C_in, T = x.shape
    w0 = params["w0"]                               # (C_out, C_in, K)
    C_out, _, K = w0.shape
    assert K % 2 == 1, "odd kernel_size expected (PyTorch pad = k // 2)"
    assert C_out % n_groups == 0, "n_groups must divide out_channels"
    use_res_conv = (C_in != C_out)

    f32 = jnp.float32
    col = lambda v: v.reshape(-1, 1).astype(f32)

    # generation-aware VMEM limit / chunking budget
    cap = _tpu_vmem_capacity_bytes()                # 64 MiB v7x, 128 MiB v5e/v6e
    if vmem_limit_bytes is None:
        vmem_limit_bytes = min(int(cap * 3 // 4), 100 << 20)
    if min_batch_chunks is None:
        min_batch_chunks = _default_min_chunks()
    budget = int(vmem_limit_bytes * 3 // 4)

    chunk = _pick_batch_chunk(B, T, C_in, C_out, K, budget, min_batch_chunks)
    n_chunks = -(-B // chunk)
    Bp = n_chunks * chunk                           # padded batch (non-divisor B supported)
    BT = chunk * T
    SP = chunk if n_chunks == 1 else ((chunk + 127) // 128) * 128   # padded samples/chunk

    # lane-dense input slab (channels, batch*horizon), batch padded with zeros
    x_slab = jnp.transpose(x, (1, 0, 2)).reshape(C_in, B * T).astype(f32)
    if Bp != B:
        x_slab = jnp.pad(x_slab, ((0, 0), (0, (Bp - B) * T)))

    # FiLM path hoisted out of the kernel: Mish -> Linear, shipped compact as
    # per-sample columns packed per chunk (NO T-fold pre-broadcast).
    emb = _mish_ref(cond.astype(f32)) @ params["wc"].astype(f32).T + params["bc"].astype(f32)

    def to_chunked(cb):                             # (C_out, B) -> (C_out, n_chunks*SP)
        cb = jnp.pad(cb, ((0, 0), (0, Bp - B)))
        cb = cb.reshape(C_out, n_chunks, chunk)
        cb = jnp.pad(cb, ((0, 0), (0, 0), (0, SP - chunk)))
        return cb.reshape(C_out, n_chunks * SP)

    sc_arr = to_chunked(emb[:, :C_out].T)
    bi_arr = to_chunked(emb[:, C_out:].T)

    # conv weights per tap: (K, C_out, C_in); matmul operands in mm_dtype
    w0_taps = jnp.transpose(w0, (2, 0, 1)).astype(mm_dtype)
    w1_taps = jnp.transpose(params["w1"], (2, 0, 1)).astype(mm_dtype)

    # grid-invariant one-hot selectors built ONCE in the wrapper (hoisted out
    # of the kernel): lane -> in-chunk sample, channel -> group (gamma folded).
    sample_of_lane = jnp.arange(BT, dtype=jnp.int32) // T
    seg = (sample_of_lane[:, None] ==
           jnp.arange(SP, dtype=jnp.int32)[None, :]).astype(f32)       # (BT, SP)
    seg_t = seg.T                                                      # (SP, BT)
    group_of_ch = jnp.arange(C_out, dtype=jnp.int32) // (C_out // n_groups)
    grp = (jnp.arange(n_groups, dtype=jnp.int32)[:, None] ==
           group_of_ch[None, :]).astype(f32)                            # (G, C_out)
    gtg0 = grp.T * col(params["g0"])                                    # (C_out, G)
    gtg1 = grp.T * col(params["g1"])

    # small per-channel columns merged into one resident array
    cols_list = [col(params["b0"]), col(params["beta0"]),
                 col(params["b1"]), col(params["beta1"])]
    if use_res_conv:
        cols_list.append(col(params["br"]))
    cols = jnp.concatenate(cols_list, axis=1)                           # (C_out, 4|5)

    resident = lambda shape: pl.BlockSpec(shape, lambda i: tuple(0 for _ in shape))

    args = [x_slab, sc_arr, bi_arr, w0_taps, w1_taps, cols, grp, gtg0, gtg1, seg, seg_t]
    in_specs = [pl.BlockSpec((C_in, BT), lambda i: (0, i)),
                pl.BlockSpec((C_out, SP), lambda i: (0, i)),
                pl.BlockSpec((C_out, SP), lambda i: (0, i)),
                resident((K, C_out, C_in)), resident((K, C_out, C_out)),
                resident(tuple(cols.shape)), resident((n_groups, C_out)),
                resident((C_out, n_groups)), resident((C_out, n_groups)),
                resident((BT, SP)), resident((SP, BT))]
    if use_res_conv:
        args.append(params["wr"].astype(mm_dtype))
        in_specs.append(resident((C_out, C_in)))

    kernel = functools.partial(
        _film_resblock_kernel, T=T, K=K, n_groups=n_groups,
        use_res_conv=use_res_conv, eps=eps, mm_dtype=mm_dtype)

    grid_spec = pltpu.PrefetchScalarGridSpec(
        num_scalar_prefetch=0,
        grid=(n_chunks,),
        in_specs=in_specs,
        out_specs=pl.BlockSpec((C_out, BT), lambda i: (0, i)),
    )

    out_slab = pl.pallas_call(
        kernel,
        out_shape=jax.ShapeDtypeStruct((C_out, Bp * T), x.dtype),
        grid_spec=grid_spec,
        compiler_params=pltpu.CompilerParams(
            dimension_semantics=("parallel",),      # batch chunks are independent
            vmem_limit_bytes=int(vmem_limit_bytes),
        ),
    )(*args)

    out_slab = out_slab[:, :B * T]
    return jnp.transpose(out_slab.reshape(C_out, B, T), (1, 0, 2))


# ----------------------------- pure-JAX reference -----------------------------
def ref_forward(x, cond, params, *, n_groups=1, eps=1e-5):
    C_out, _, K = params["w0"].shape

    def conv1d(z, w, b, pad):
        y = jax.lax.conv_general_dilated(
            z, w, window_strides=(1,), padding=[(pad, pad)],
            dimension_numbers=("NCH", "OIH", "NCH"))
        return y + b[None, :, None]

    def gn(y, gamma, beta):
        B, C, T = y.shape
        yg = y.reshape(B, n_groups, (C // n_groups) * T)
        m = yg.mean(-1, keepdims=True)
        v = ((yg - m) ** 2).mean(-1, keepdims=True)
        yn = ((yg - m) * jax.lax.rsqrt(v + eps)).reshape(B, C, T)
        return yn * gamma[None, :, None] + beta[None, :, None]

    h = _mish_ref(gn(conv1d(x, params["w0"], params["b0"], K // 2),
                     params["g0"], params["beta0"]))
    emb = _mish_ref(cond) @ params["wc"].T + params["bc"]
    scale = emb[:, :C_out][:, :, None]
    bias = emb[:, C_out:][:, :, None]
    h = scale * h + bias
    h = _mish_ref(gn(conv1d(h, params["w1"], params["b1"], K // 2),
                     params["g1"], params["beta1"]))
    if x.shape[1] != C_out:
        res = conv1d(x, params["wr"][:, :, None], params["br"], 0)
    else:
        res = x
    return h + res


def init_params(key, C_in, C_out, cond_dim, K):
    ks = jax.random.split(key, 12)
    s = 0.2
    f32 = jnp.float32
    return dict(
        w0=(jax.random.normal(ks[0], (C_out, C_in, K)) * s).astype(f32),
        b0=(jax.random.normal(ks[1], (C_out,)) * s).astype(f32),
        g0=(1.0 + jax.random.normal(ks[2], (C_out,)) * s).astype(f32),
        beta0=(jax.random.normal(ks[3], (C_out,)) * s).astype(f32),
        wc=(jax.random.normal(ks[4], (2 * C_out, cond_dim)) * s).astype(f32),
        bc=(jax.random.normal(ks[5], (2 * C_out,)) * s).astype(f32),
        w1=(jax.random.normal(ks[6], (C_out, C_out, K)) * s).astype(f32),
        b1=(jax.random.normal(ks[7], (C_out,)) * s).astype(f32),
        g1=(1.0 + jax.random.normal(ks[8], (C_out,)) * s).astype(f32),
        beta1=(jax.random.normal(ks[9], (C_out,)) * s).astype(f32),
        wr=(jax.random.normal(ks[10], (C_out, C_in)) * s).astype(f32),
        br=(jax.random.normal(ks[11], (C_out,)) * s).astype(f32),
    )


if __name__ == "__main__":
    B, C_in, C_out, cond_dim, T, K, G = 2, 4, 8, 16, 16, 3, 1

    key = jax.random.PRNGKey(0)
    kx, kc, kp = jax.random.split(key, 3)
    x = jax.random.normal(kx, (B, C_in, T), jnp.float32)
    cond = jax.random.normal(kc, (B, cond_dim), jnp.float32)
    params = init_params(kp, C_in, C_out, cond_dim, K)
    ref = ref_forward(x, cond, params, n_groups=G)

    # default path: bf16 MXU operands (all generations), f32 elementwise math
    out = jax.block_until_ready(film_resblock(x, cond, params, n_groups=G))
    assert out.shape == (B, C_out, T)
    assert jnp.allclose(out, ref, atol=1e-1, rtol=1e-1), float(jnp.max(jnp.abs(out - ref)))

    # f32 matmul operands: tight check (residual error ~ approx-reciprocal Mish)
    out32 = jax.block_until_ready(
        film_resblock(x, cond, params, n_groups=G, mm_dtype=jnp.float32))
    assert jnp.allclose(out32, ref, atol=1e-2, rtol=1e-2), float(jnp.max(jnp.abs(out32 - ref)))

    # identity residual (C_in == C_out, no wr/br DMA) and n_groups > 1 path
    params2 = init_params(jax.random.PRNGKey(1), C_out, C_out, cond_dim, K)
    x2 = jax.random.normal(jax.random.PRNGKey(2), (B, C_out, T), jnp.float32)
    ref2 = ref_forward(x2, cond, params2, n_groups=2)
    out2 = jax.block_until_ready(
        film_resblock(x2, cond, params2, n_groups=2, mm_dtype=jnp.float32))
    assert jnp.allclose(out2, ref2, atol=1e-2, rtol=1e-2), float(jnp.max(jnp.abs(out2 - ref2)))

    # multi-chunk ("parallel" 2-step grid, lane-dense 128-wide blocks) path
    B3 = 16
    x3 = jax.random.normal(jax.random.PRNGKey(3), (B3, C_in, T), jnp.float32)
    cond3 = jax.random.normal(jax.random.PRNGKey(4), (B3, cond_dim), jnp.float32)
    params3 = init_params(jax.random.PRNGKey(5), C_in, C_out, cond_dim, K)
    ref3 = ref_forward(x3, cond3, params3, n_groups=2)
    out3 = jax.block_until_ready(
        film_resblock(x3, cond3, params3, n_groups=2, mm_dtype=jnp.float32,
                      min_batch_chunks=2))
    assert jnp.allclose(out3, ref3, atol=1e-2, rtol=1e-2), float(jnp.max(jnp.abs(out3 - ref3)))

    print("KERNEL_OK")
</pallas_src>

<mosaic_0001>
module attributes {stable_mosaic.version = 11 : i64} {
  func.func @_film_resblock_kernel(%arg0: i32, %arg1: memref<4x32xf32, #tpu.memory_space<vmem>>, %arg2: memref<8x2xf32, #tpu.memory_space<vmem>>, %arg3: memref<8x2xf32, #tpu.memory_space<vmem>>, %arg4: memref<3x8x4xbf16, #tpu.memory_space<vmem>>, %arg5: memref<3x8x8xbf16, #tpu.memory_space<vmem>>, %arg6: memref<8x5xf32, #tpu.memory_space<vmem>>, %arg7: memref<1x8xf32, #tpu.memory_space<vmem>>, %arg8: memref<8x1xf32, #tpu.memory_space<vmem>>, %arg9: memref<8x1xf32, #tpu.memory_space<vmem>>, %arg10: memref<32x2xf32, #tpu.memory_space<vmem>>, %arg11: memref<2x32xf32, #tpu.memory_space<vmem>>, %arg12: memref<8x4xbf16, #tpu.memory_space<vmem>>, %arg13: memref<8x32xf32, #tpu.memory_space<vmem>>) attributes {dimension_semantics = [#tpu.dimension_semantics<parallel>], iteration_bounds = array<i64: 1>, scalar_prefetch = 0 : i64, scratch_operands = 0 : i64, tpu.core_type = #tpu.core_type<tc>, window_params = [{transform_indices = @transform_0, window_bounds = array<i64: 4, 32>}, {transform_indices = @transform_1, window_bounds = array<i64: 8, 2>}, {transform_indices = @transform_2, window_bounds = array<i64: 8, 2>}, {pipeline_mode = #tpu.pipeline_mode<synchronous>, transform_indices = @transform_3, window_bounds = array<i64: 3, 8, 4>}, {pipeline_mode = #tpu.pipeline_mode<synchronous>, transform_indices = @transform_4, window_bounds = array<i64: 3, 8, 8>}, {pipeline_mode = #tpu.pipeline_mode<synchronous>, transform_indices = @transform_5, window_bounds = array<i64: 8, 5>}, {pipeline_mode = #tpu.pipeline_mode<synchronous>, transform_indices = @transform_6, window_bounds = array<i64: 1, 8>}, {pipeline_mode = #tpu.pipeline_mode<synchronous>, transform_indices = @transform_7, window_bounds = array<i64: 8, 1>}, {pipeline_mode = #tpu.pipeline_mode<synchronous>, transform_indices = @transform_8, window_bounds = array<i64: 8, 1>}, {pipeline_mode = #tpu.pipeline_mode<synchronous>, transform_indices = @transform_9, window_bounds = array<i64: 32, 2>}, {pipeline_mode = #tpu.pipeline_mode<synchronous>, transform_indices = @transform_10, window_bounds = array<i64: 2, 32>}, {pipeline_mode = #tpu.pipeline_mode<synchronous>, transform_indices = @transform_11, window_bounds = array<i64: 8, 4>}, {transform_indices = @transform_12, window_bounds = array<i64: 8, 32>}]} {
    %c0 = arith.constant 0 : index
    %c0_0 = arith.constant 0 : index
    %0 = vector.load %arg1[%c0, %c0_0] : memref<4x32xf32, #tpu.memory_space<vmem>>, vector<4x32xf32>
    %c0_1 = arith.constant 0 : index
    %c0_2 = arith.constant 0 : index
    %1 = vector.load %arg10[%c0_1, %c0_2] : memref<32x2xf32, #tpu.memory_space<vmem>>, vector<32x2xf32>
    %c0_3 = arith.constant 0 : index
    %c0_4 = arith.constant 0 : index
    %2 = vector.load %arg11[%c0_3, %c0_4] : memref<2x32xf32, #tpu.memory_space<vmem>>, vector<2x32xf32>
    %c0_5 = arith.constant 0 : index
    %c0_6 = arith.constant 0 : index
    %3 = vector.load %arg7[%c0_5, %c0_6] : memref<1x8xf32, #tpu.memory_space<vmem>>, vector<1x8xf32>
    %c0_7 = arith.constant 0 : index
    %c0_8 = arith.constant 0 : index
    %4 = vector.load %arg6[%c0_7, %c0_8] : memref<8x5xf32, #tpu.memory_space<vmem>>, vector<8x5xf32>
    %5 = vector.extract_strided_slice %4 {offsets = [0, 0], sizes = [8, 1], strides = [1, 1]} : vector<8x5xf32> to vector<8x1xf32>
    %6 = vector.extract_strided_slice %4 {offsets = [0, 1], sizes = [8, 1], strides = [1, 1]} : vector<8x5xf32> to vector<8x1xf32>
    %7 = vector.extract_strided_slice %4 {offsets = [0, 2], sizes = [8, 1], strides = [1, 1]} : vector<8x5xf32> to vector<8x1xf32>
    %8 = vector.extract_strided_slice %4 {offsets = [0, 3], sizes = [8, 1], strides = [1, 1]} : vector<8x5xf32> to vector<8x1xf32>
    %9 = tpu.iota {dimensions = array<i32: 1>} : vector<1x32xi32>
    %c16_i32 = arith.constant 16 : i32
    %c0_i32 = arith.constant 0 : i32
    %10 = arith.cmpi eq, %c16_i32, %c0_i32 : i32
    %c1_i32 = arith.constant 1 : i32
    %11 = arith.select %10, %c1_i32, %c16_i32 : i32
    %12 = vector.broadcast %11 : i32 to vector<1x32xi32>
    %13 = arith.remsi %9, %12 : vector<1x32xi32>
    %c0_i32_9 = arith.constant 0 : i32
    %14 = vector.broadcast %c0_i32_9 : i32 to vector<1x32xi32>
    %15 = arith.cmpi ne, %13, %14 : vector<1x32xi32>
    %c0_i32_10 = arith.constant 0 : i32
    %16 = vector.broadcast %c0_i32_10 : i32 to vector<1x32xi32>
    %17 = arith.cmpi slt, %13, %16 : vector<1x32xi32>
    %c0_i32_11 = arith.constant 0 : i32
    %18 = arith.cmpi slt, %11, %c0_i32_11 : i32
    %19 = vector.broadcast %18 : i1 to vector<1x32xi1>
    %20 = vector.broadcast %19 : vector<1x32xi1> to vector<1x32xi1>
    %21 = arith.xori %17, %20 : vector<1x32xi1>
    %22 = arith.andi %21, %15 : vector<1x32xi1>
    %23 = vector.broadcast %11 : i32 to vector<1x32xi32>
    %24 = arith.addi %13, %23 : vector<1x32xi32>
    %25 = arith.select %22, %24, %13 : vector<1x32xi1>, vector<1x32xi32>
    %cst = arith.constant 0.000000e+00 : f32
    %26 = vector.broadcast %cst : f32 to vector<8x32xf32>
    %c1_i32_12 = arith.constant 1 : i32
    %27 = tpu.dynamic_rotate %0 by %c1_i32_12 dim 1 : vector<4x32xf32>, i32 -> vector<4x32xf32>
    %c-1_i32 = arith.constant -1 : i32
    %28 = vector.broadcast %c-1_i32 : i32 to vector<1x32xi32>
    %29 = arith.addi %25, %28 : vector<1x32xi32>
    %c0_i32_13 = arith.constant 0 : i32
    %30 = vector.broadcast %c0_i32_13 : i32 to vector<1x32xi32>
    %31 = arith.cmpi sge, %29, %30 : vector<1x32xi32>
    %c-1_i32_14 = arith.constant -1 : i32
    %32 = vector.broadcast %c-1_i32_14 : i32 to vector<1x32xi32>
    %33 = arith.addi %25, %32 : vector<1x32xi32>
    %c16_i32_15 = arith.constant 16 : i32
    %34 = vector.broadcast %c16_i32_15 : i32 to vector<1x32xi32>
    %35 = arith.cmpi slt, %33, %34 : vector<1x32xi32>
    %36 = arith.andi %31, %35 : vector<1x32xi1>
    %cst_16 = arith.constant 0.000000e+00 : f32
    %37 = vector.shape_cast %36 : vector<1x32xi1> to vector<1x32xi1>
    %38 = vector.broadcast %37 : vector<1x32xi1> to vector<4x32xi1>
    %39 = vector.broadcast %cst_16 : f32 to vector<4x32xf32>
    %40 = arith.select %38, %27, %39 : vector<4x32xi1>, vector<4x32xf32>
    %c0_17 = arith.constant 0 : index
    %c0_18 = arith.constant 0 : index
    %c0_19 = arith.constant 0 : index
    %41 = vector.load %arg4[%c0_17, %c0_18, %c0_19] : memref<3x8x4xbf16, #tpu.memory_space<vmem>>, vector<1x8x4xbf16>
    %42 = vector.shape_cast %41 : vector<1x8x4xbf16> to vector<8x4xbf16>
    %43 = arith.truncf %40 : vector<4x32xf32> to vector<4x32xbf16>
    %cst_20 = arith.constant dense<0.000000e+00> : vector<8x32xf32>
    %44 = tpu.matmul %42, %43, %cst_20 {dimension_numbers = #tpu.dot_dimension_numbers<[1], [0], [0], [1], [0, 0, 1, 1], [], []>} : vector<8x4xbf16>, vector<4x32xbf16>, vector<8x32xf32> -> vector<8x32xf32>
    %45 = arith.addf %26, %44 : vector<8x32xf32>
    %c1 = arith.constant 1 : index
    %c0_21 = arith.constant 0 : index
    %c0_22 = arith.constant 0 : index
    %46 = vector.load %arg4[%c1, %c0_21, %c0_22] : memref<3x8x4xbf16, #tpu.memory_space<vmem>>, vector<1x8x4xbf16>
    %47 = vector.shape_cast %46 : vector<1x8x4xbf16> to vector<8x4xbf16>
    %48 = arith.truncf %0 : vector<4x32xf32> to vector<4x32xbf16>
    %cst_23 = arith.constant dense<0.000000e+00> : vector<8x32xf32>
    %49 = tpu.matmul %47, %48, %cst_23 {dimension_numbers = #tpu.dot_dimension_numbers<[1], [0], [0], [1], [0, 0, 1, 1], [], []>} : vector<8x4xbf16>, vector<4x32xbf16>, vector<8x32xf32> -> vector<8x32xf32>
    %50 = arith.addf %45, %49 : vector<8x32xf32>
    %c31_i32 = arith.constant 31 : i32
    %51 = tpu.dynamic_rotate %0 by %c31_i32 dim 1 : vector<4x32xf32>, i32 -> vector<4x32xf32>
    %c1_i32_24 = arith.constant 1 : i32
    %52 = vector.broadcast %c1_i32_24 : i32 to vector<1x32xi32>
    %53 = arith.addi %25, %52 : vector<1x32xi32>
    %c0_i32_25 = arith.constant 0 : i32
    %54 = vector.broadcast %c0_i32_25 : i32 to vector<1x32xi32>
    %55 = arith.cmpi sge, %53, %54 : vector<1x32xi32>
    %c1_i32_26 = arith.constant 1 : i32
    %56 = vector.broadcast %c1_i32_26 : i32 to vector<1x32xi32>
    %57 = arith.addi %25, %56 : vector<1x32xi32>
    %c16_i32_27 = arith.constant 16 : i32
    %58 = vector.broadcast %c16_i32_27 : i32 to vector<1x32xi32>
    %59 = arith.cmpi slt, %57, %58 : vector<1x32xi32>
    %60 = arith.andi %55, %59 : vector<1x32xi1>
    %cst_28 = arith.constant 0.000000e+00 : f32
    %61 = vector.shape_cast %60 : vector<1x32xi1> to vector<1x32xi1>
    %62 = vector.broadcast %61 : vector<1x32xi1> to vector<4x32xi1>
    %63 = vector.broadcast %cst_28 : f32 to vector<4x32xf32>
    %64 = arith.select %62, %51, %63 : vector<4x32xi1>, vector<4x32xf32>
    %c2 = arith.constant 2 : index
    %c0_29 = arith.constant 0 : index
    %c0_30 = arith.constant 0 : index
    %65 = vector.load %arg4[%c2, %c0_29, %c0_30] : memref<3x8x4xbf16, #tpu.memory_space<vmem>>, vector<1x8x4xbf16>
    %66 = vector.shape_cast %65 : vector<1x8x4xbf16> to vector<8x4xbf16>
    %67 = arith.truncf %64 : vector<4x32xf32> to vector<4x32xbf16>
    %cst_31 = arith.constant dense<0.000000e+00> : vector<8x32xf32>
    %68 = tpu.matmul %66, %67, %cst_31 {dimension_numbers = #tpu.dot_dimension_numbers<[1], [0], [0], [1], [0, 0, 1, 1], [], []>} : vector<8x4xbf16>, vector<4x32xbf16>, vector<8x32xf32> -> vector<8x32xf32>
    %69 = arith.addf %50, %68 : vector<8x32xf32>
    %c0_32 = arith.constant 0 : index
    %c0_33 = arith.constant 0 : index
    %70 = vector.load %arg8[%c0_32, %c0_33] : memref<8x1xf32, #tpu.memory_space<vmem>>, vector<8x1xf32>
    %cst_34 = arith.constant dense<0.000000e+00> : vector<8x2xf32>
    %71 = tpu.matmul %69, %1, %cst_34 {dimension_numbers = #tpu.dot_dimension_numbers<[1], [0], [0], [1], [0, 0, 1, 1], [], []>} : vector<8x32xf32>, vector<32x2xf32>, vector<8x2xf32> -> vector<8x2xf32>
    %72 = arith.mulf %69, %69 : vector<8x32xf32>
    %cst_35 = arith.constant dense<0.000000e+00> : vector<8x2xf32>
    %73 = tpu.matmul %72, %1, %cst_35 {dimension_numbers = #tpu.dot_dimension_numbers<[1], [0], [0], [1], [0, 0, 1, 1], [], []>} : vector<8x32xf32>, vector<32x2xf32>, vector<8x2xf32> -> vector<8x2xf32>
    %cst_36 = arith.constant 1.600000e+01 : f32
    %74 = vector.broadcast %cst_36 : f32 to vector<8x1xf32>
    %75 = arith.mulf %74, %5 : vector<8x1xf32>
    %76 = vector.broadcast %75 : vector<8x1xf32> to vector<8x2xf32>
    %77 = arith.addf %71, %76 : vector<8x2xf32>
    %cst_37 = arith.constant 2.000000e+00 : f32
    %78 = vector.broadcast %cst_37 : f32 to vector<8x1xf32>
    %79 = arith.mulf %78, %5 : vector<8x1xf32>
    %80 = vector.broadcast %79 : vector<8x1xf32> to vector<8x2xf32>
    %81 = arith.mulf %80, %71 : vector<8x2xf32>
    %82 = arith.addf %73, %81 : vector<8x2xf32>
    %83 = arith.mulf %5, %5 : vector<8x1xf32>
    %cst_38 = arith.constant 1.600000e+01 : f32
    %84 = vector.broadcast %cst_38 : f32 to vector<8x1xf32>
    %85 = arith.mulf %84, %83 : vector<8x1xf32>
    %86 = vector.broadcast %85 : vector<8x1xf32> to vector<8x2xf32>
    %87 = arith.addf %82, %86 : vector<8x2xf32>
    %cst_39 = arith.constant dense<0.000000e+00> : vector<1x2xf32>
    %88 = tpu.matmul %3, %77, %cst_39 {dimension_numbers = #tpu.dot_dimension_numbers<[1], [0], [0], [1], [0, 0, 1, 1], [], []>} : vector<1x8xf32>, vector<8x2xf32>, vector<1x2xf32> -> vector<1x2xf32>
    %cst_40 = arith.constant 7.812500e-03 : f32
    %89 = vector.broadcast %cst_40 : f32 to vector<1x2xf32>
    %90 = arith.mulf %88, %89 : vector<1x2xf32>
    %cst_41 = arith.constant dense<0.000000e+00> : vector<1x2xf32>
    %91 = tpu.matmul %3, %87, %cst_41 {dimension_numbers = #tpu.dot_dimension_numbers<[1], [0], [0], [1], [0, 0, 1, 1], [], []>} : vector<1x8xf32>, vector<8x2xf32>, vector<1x2xf32> -> vector<1x2xf32>
    %cst_42 = arith.constant 7.812500e-03 : f32
    %92 = vector.broadcast %cst_42 : f32 to vector<1x2xf32>
    %93 = arith.mulf %91, %92 : vector<1x2xf32>
    %94 = arith.mulf %90, %90 : vector<1x2xf32>
    %95 = arith.subf %93, %94 : vector<1x2xf32>
    %cst_43 = arith.constant 0.000000e+00 : f32
    %96 = vector.broadcast %cst_43 : f32 to vector<1x2xf32>
    %97 = arith.maximumf %95, %96 : vector<1x2xf32>
    %cst_44 = arith.constant 9.99999974E-6 : f32
    %98 = vector.broadcast %cst_44 : f32 to vector<1x2xf32>
    %99 = arith.addf %97, %98 : vector<1x2xf32>
    %100 = math.rsqrt %99 : vector<1x2xf32>
    %cst_45 = arith.constant dense<0.000000e+00> : vector<8x2xf32>
    %101 = tpu.matmul %70, %100, %cst_45 {dimension_numbers = #tpu.dot_dimension_numbers<[1], [0], [0], [1], [0, 0, 1, 1], [], []>} : vector<8x1xf32>, vector<1x2xf32>, vector<8x2xf32> -> vector<8x2xf32>
    %102 = vector.broadcast %5 : vector<8x1xf32> to vector<8x2xf32>
    %103 = arith.mulf %102, %101 : vector<8x2xf32>
    %104 = vector.broadcast %6 : vector<8x1xf32> to vector<8x2xf32>
    %105 = arith.addf %104, %103 : vector<8x2xf32>
    %106 = arith.mulf %90, %100 : vector<1x2xf32>
    %cst_46 = arith.constant dense<0.000000e+00> : vector<8x2xf32>
    %107 = tpu.matmul %70, %106, %cst_46 {dimension_numbers = #tpu.dot_dimension_numbers<[1], [0], [0], [1], [0, 0, 1, 1], [], []>} : vector<8x1xf32>, vector<1x2xf32>, vector<8x2xf32> -> vector<8x2xf32>
    %108 = arith.subf %105, %107 : vector<8x2xf32>
    %cst_47 = arith.constant dense<0.000000e+00> : vector<8x32xf32>
    %109 = tpu.matmul %101, %2, %cst_47 {dimension_numbers = #tpu.dot_dimension_numbers<[1], [0], [0], [1], [0, 0, 1, 1], [], []>} : vector<8x2xf32>, vector<2x32xf32>, vector<8x32xf32> -> vector<8x32xf32>
    %cst_48 = arith.constant dense<0.000000e+00> : vector<8x32xf32>
    %110 = tpu.matmul %108, %2, %cst_48 {dimension_numbers = #tpu.dot_dimension_numbers<[1], [0], [0], [1], [0, 0, 1, 1], [], []>} : vector<8x2xf32>, vector<2x32xf32>, vector<8x32xf32> -> vector<8x32xf32>
    %111 = arith.mulf %69, %109 : vector<8x32xf32>
    %112 = arith.addf %111, %110 : vector<8x32xf32>
    %cst_49 = arith.constant 2.000000e+01 : f32
    %113 = vector.broadcast %cst_49 : f32 to vector<8x32xf32>
    %114 = arith.minimumf %112, %113 : vector<8x32xf32>
    %115 = math.exp %114 : vector<8x32xf32>
    %cst_50 = arith.constant 1.000000e+00 : f32
    %116 = vector.broadcast %cst_50 : f32 to vector<8x32xf32>
    %117 = arith.addf %116, %115 : vector<8x32xf32>
    %cst_51 = arith.constant 1.000000e+00 : f32
    %118 = vector.broadcast %cst_51 : f32 to vector<8x32xf32>
    %119 = arith.addf %118, %115 : vector<8x32xf32>
    %120 = arith.mulf %117, %119 : vector<8x32xf32>
    %cst_52 = arith.constant 1.000000e+00 : f32
    %121 = vector.broadcast %cst_52 : f32 to vector<8x32xf32>
    %122 = arith.subf %120, %121 : vector<8x32xf32>
    %123 = arith.mulf %112, %122 : vector<8x32xf32>
    %cst_53 = arith.constant 1.000000e+00 : f32
    %124 = vector.broadcast %cst_53 : f32 to vector<8x32xf32>
    %125 = arith.addf %120, %124 : vector<8x32xf32>
    %126 = tpu.reciprocal %125 {approx = true} : vector<8x32xf32> -> vector<8x32xf32>
    %127 = arith.mulf %123, %126 : vector<8x32xf32>
    %cst_54 = arith.constant 2.000000e+01 : f32
    %128 = vector.broadcast %cst_54 : f32 to vector<8x32xf32>
    %129 = arith.cmpf ogt, %112, %128 : vector<8x32xf32>
    %130 = arith.select %129, %112, %127 : vector<8x32xi1>, vector<8x32xf32>
    %c0_55 = arith.constant 0 : index
    %c0_56 = arith.constant 0 : index
    %131 = vector.load %arg2[%c0_55, %c0_56] : memref<8x2xf32, #tpu.memory_space<vmem>>, vector<8x2xf32>
    %cst_57 = arith.constant dense<0.000000e+00> : vector<8x32xf32>
    %132 = tpu.matmul %131, %2, %cst_57 {dimension_numbers = #tpu.dot_dimension_numbers<[1], [0], [0], [1], [0, 0, 1, 1], [], []>} : vector<8x2xf32>, vector<2x32xf32>, vector<8x32xf32> -> vector<8x32xf32>
    %c0_58 = arith.constant 0 : index
    %c0_59 = arith.constant 0 : index
    %133 = vector.load %arg3[%c0_58, %c0_59] : memref<8x2xf32, #tpu.memory_space<vmem>>, vector<8x2xf32>
    %cst_60 = arith.constant dense<0.000000e+00> : vector<8x32xf32>
    %134 = tpu.matmul %133, %2, %cst_60 {dimension_numbers = #tpu.dot_dimension_numbers<[1], [0], [0], [1], [0, 0, 1, 1], [], []>} : vector<8x2xf32>, vector<2x32xf32>, vector<8x32xf32> -> vector<8x32xf32>
    %135 = arith.mulf %132, %130 : vector<8x32xf32>
    %136 = arith.addf %135, %134 : vector<8x32xf32>
    %cst_61 = arith.constant 0.000000e+00 : f32
    %137 = vector.broadcast %cst_61 : f32 to vector<8x32xf32>
    %c1_i32_62 = arith.constant 1 : i32
    %138 = tpu.dynamic_rotate %136 by %c1_i32_62 dim 1 : vector<8x32xf32>, i32 -> vector<8x32xf32>
    %c-1_i32_63 = arith.constant -1 : i32
    %139 = vector.broadcast %c-1_i32_63 : i32 to vector<1x32xi32>
    %140 = arith.addi %25, %139 : vector<1x32xi32>
    %c0_i32_64 = arith.constant 0 : i32
    %141 = vector.broadcast %c0_i32_64 : i32 to vector<1x32xi32>
    %142 = arith.cmpi sge, %140, %141 : vector<1x32xi32>
    %c-1_i32_65 = arith.constant -1 : i32
    %143 = vector.broadcast %c-1_i32_65 : i32 to vector<1x32xi32>
    %144 = arith.addi %25, %143 : vector<1x32xi32>
    %c16_i32_66 = arith.constant 16 : i32
    %145 = vector.broadcast %c16_i32_66 : i32 to vector<1x32xi32>
    %146 = arith.cmpi slt, %144, %145 : vector<1x32xi32>
    %147 = arith.andi %142, %146 : vector<1x32xi1>
    %cst_67 = arith.constant 0.000000e+00 : f32
    %148 = vector.shape_cast %147 : vector<1x32xi1> to vector<1x32xi1>
    %149 = vector.broadcast %148 : vector<1x32xi1> to vector<8x32xi1>
    %150 = vector.broadcast %cst_67 : f32 to vector<8x32xf32>
    %151 = arith.select %149, %138, %150 : vector<8x32xi1>, vector<8x32xf32>
    %c0_68 = arith.constant 0 : index
    %c0_69 = arith.constant 0 : index
    %c0_70 = arith.constant 0 : index
    %152 = vector.load %arg5[%c0_68, %c0_69, %c0_70] : memref<3x8x8xbf16, #tpu.memory_space<vmem>>, vector<1x8x8xbf16>
    %153 = vector.shape_cast %152 : vector<1x8x8xbf16> to vector<8x8xbf16>
    %154 = arith.truncf %151 : vector<8x32xf32> to vector<8x32xbf16>
    %cst_71 = arith.constant dense<0.000000e+00> : vector<8x32xf32>
    %155 = tpu.matmul %153, %154, %cst_71 {dimension_numbers = #tpu.dot_dimension_numbers<[1], [0], [0], [1], [0, 0, 1, 1], [], []>} : vector<8x8xbf16>, vector<8x32xbf16>, vector<8x32xf32> -> vector<8x32xf32>
    %156 = arith.addf %137, %155 : vector<8x32xf32>
    %c1_72 = arith.constant 1 : index
    %c0_73 = arith.constant 0 : index
    %c0_74 = arith.constant 0 : index
    %157 = vector.load %arg5[%c1_72, %c0_73, %c0_74] : memref<3x8x8xbf16, #tpu.memory_space<vmem>>, vector<1x8x8xbf16>
    %158 = vector.shape_cast %157 : vector<1x8x8xbf16> to vector<8x8xbf16>
    %159 = arith.truncf %136 : vector<8x32xf32> to vector<8x32xbf16>
    %cst_75 = arith.constant dense<0.000000e+00> : vector<8x32xf32>
    %160 = tpu.matmul %158, %159, %cst_75 {dimension_numbers = #tpu.dot_dimension_numbers<[1], [0], [0], [1], [0, 0, 1, 1], [], []>} : vector<8x8xbf16>, vector<8x32xbf16>, vector<8x32xf32> -> vector<8x32xf32>
    %161 = arith.addf %156, %160 : vector<8x32xf32>
    %c31_i32_76 = arith.constant 31 : i32
    %162 = tpu.dynamic_rotate %136 by %c31_i32_76 dim 1 : vector<8x32xf32>, i32 -> vector<8x32xf32>
    %c1_i32_77 = arith.constant 1 : i32
    %163 = vector.broadcast %c1_i32_77 : i32 to vector<1x32xi32>
    %164 = arith.addi %25, %163 : vector<1x32xi32>
    %c0_i32_78 = arith.constant 0 : i32
    %165 = vector.broadcast %c0_i32_78 : i32 to vector<1x32xi32>
    %166 = arith.cmpi sge, %164, %165 : vector<1x32xi32>
    %c1_i32_79 = arith.constant 1 : i32
    %167 = vector.broadcast %c1_i32_79 : i32 to vector<1x32xi32>
    %168 = arith.addi %25, %167 : vector<1x32xi32>
    %c16_i32_80 = arith.constant 16 : i32
    %169 = vector.broadcast %c16_i32_80 : i32 to vector<1x32xi32>
    %170 = arith.cmpi slt, %168, %169 : vector<1x32xi32>
    %171 = arith.andi %166, %170 : vector<1x32xi1>
    %cst_81 = arith.constant 0.000000e+00 : f32
    %172 = vector.shape_cast %171 : vector<1x32xi1> to vector<1x32xi1>
    %173 = vector.broadcast %172 : vector<1x32xi1> to vector<8x32xi1>
    %174 = vector.broadcast %cst_81 : f32 to vector<8x32xf32>
    %175 = arith.select %173, %162, %174 : vector<8x32xi1>, vector<8x32xf32>
    %c2_82 = arith.constant 2 : index
    %c0_83 = arith.constant 0 : index
    %c0_84 = arith.constant 0 : index
    %176 = vector.load %arg5[%c2_82, %c0_83, %c0_84] : memref<3x8x8xbf16, #tpu.memory_space<vmem>>, vector<1x8x8xbf16>
    %177 = vector.shape_cast %176 : vector<1x8x8xbf16> to vector<8x8xbf16>
    %178 = arith.truncf %175 : vector<8x32xf32> to vector<8x32xbf16>
    %cst_85 = arith.constant dense<0.000000e+00> : vector<8x32xf32>
    %179 = tpu.matmul %177, %178, %cst_85 {dimension_numbers = #tpu.dot_dimension_numbers<[1], [0], [0], [1], [0, 0, 1, 1], [], []>} : vector<8x8xbf16>, vector<8x32xbf16>, vector<8x32xf32> -> vector<8x32xf32>
    %180 = arith.addf %161, %179 : vector<8x32xf32>
    %c0_86 = arith.constant 0 : index
    %c0_87 = arith.constant 0 : index
    %181 = vector.load %arg9[%c0_86, %c0_87] : memref<8x1xf32, #tpu.memory_space<vmem>>, vector<8x1xf32>
    %cst_88 = arith.constant dense<0.000000e+00> : vector<8x2xf32>
    %182 = tpu.matmul %180, %1, %cst_88 {dimension_numbers = #tpu.dot_dimension_numbers<[1], [0], [0], [1], [0, 0, 1, 1], [], []>} : vector<8x32xf32>, vector<32x2xf32>, vector<8x2xf32> -> vector<8x2xf32>
    %183 = arith.mulf %180, %180 : vector<8x32xf32>
    %cst_89 = arith.constant dense<0.000000e+00> : vector<8x2xf32>
    %184 = tpu.matmul %183, %1, %cst_89 {dimension_numbers = #tpu.dot_dimension_numbers<[1], [0], [0], [1], [0, 0, 1, 1], [], []>} : vector<8x32xf32>, vector<32x2xf32>, vector<8x2xf32> -> vector<8x2xf32>
    %cst_90 = arith.constant 1.600000e+01 : f32
    %185 = vector.broadcast %cst_90 : f32 to vector<8x1xf32>
    %186 = arith.mulf %185, %7 : vector<8x1xf32>
    %187 = vector.broadcast %186 : vector<8x1xf32> to vector<8x2xf32>
    %188 = arith.addf %182, %187 : vector<8x2xf32>
    %cst_91 = arith.constant 2.000000e+00 : f32
    %189 = vector.broadcast %cst_91 : f32 to vector<8x1xf32>
    %190 = arith.mulf %189, %7 : vector<8x1xf32>
    %191 = vector.broadcast %190 : vector<8x1xf32> to vector<8x2xf32>
    %192 = arith.mulf %191, %182 : vector<8x2xf32>
    %193 = arith.addf %184, %192 : vector<8x2xf32>
    %194 = arith.mulf %7, %7 : vector<8x1xf32>
    %cst_92 = arith.constant 1.600000e+01 : f32
    %195 = vector.broadcast %cst_92 : f32 to vector<8x1xf32>
    %196 = arith.mulf %195, %194 : vector<8x1xf32>
    %197 = vector.broadcast %196 : vector<8x1xf32> to vector<8x2xf32>
    %198 = arith.addf %193, %197 : vector<8x2xf32>
    %cst_93 = arith.constant dense<0.000000e+00> : vector<1x2xf32>
    %199 = tpu.matmul %3, %188, %cst_93 {dimension_numbers = #tpu.dot_dimension_numbers<[1], [0], [0], [1], [0, 0, 1, 1], [], []>} : vector<1x8xf32>, vector<8x2xf32>, vector<1x2xf32> -> vector<1x2xf32>
    %cst_94 = arith.constant 7.812500e-03 : f32
    %200 = vector.broadcast %cst_94 : f32 to vector<1x2xf32>
    %201 = arith.mulf %199, %200 : vector<1x2xf32>
    %cst_95 = arith.constant dense<0.000000e+00> : vector<1x2xf32>
    %202 = tpu.matmul %3, %198, %cst_95 {dimension_numbers = #tpu.dot_dimension_numbers<[1], [0], [0], [1], [0, 0, 1, 1], [], []>} : vector<1x8xf32>, vector<8x2xf32>, vector<1x2xf32> -> vector<1x2xf32>
    %cst_96 = arith.constant 7.812500e-03 : f32
    %203 = vector.broadcast %cst_96 : f32 to vector<1x2xf32>
    %204 = arith.mulf %202, %203 : vector<1x2xf32>
    %205 = arith.mulf %201, %201 : vector<1x2xf32>
    %206 = arith.subf %204, %205 : vector<1x2xf32>
    %cst_97 = arith.constant 0.000000e+00 : f32
    %207 = vector.broadcast %cst_97 : f32 to vector<1x2xf32>
    %208 = arith.maximumf %206, %207 : vector<1x2xf32>
    %cst_98 = arith.constant 9.99999974E-6 : f32
    %209 = vector.broadcast %cst_98 : f32 to vector<1x2xf32>
    %210 = arith.addf %208, %209 : vector<1x2xf32>
    %211 = math.rsqrt %210 : vector<1x2xf32>
    %cst_99 = arith.constant dense<0.000000e+00> : vector<8x2xf32>
    %212 = tpu.matmul %181, %211, %cst_99 {dimension_numbers = #tpu.dot_dimension_numbers<[1], [0], [0], [1], [0, 0, 1, 1], [], []>} : vector<8x1xf32>, vector<1x2xf32>, vector<8x2xf32> -> vector<8x2xf32>
    %213 = vector.broadcast %7 : vector<8x1xf32> to vector<8x2xf32>
    %214 = arith.mulf %213, %212 : vector<8x2xf32>
    %215 = vector.broadcast %8 : vector<8x1xf32> to vector<8x2xf32>
    %216 = arith.addf %215, %214 : vector<8x2xf32>
    %217 = arith.mulf %201, %211 : vector<1x2xf32>
    %cst_100 = arith.constant dense<0.000000e+00> : vector<8x2xf32>
    %218 = tpu.matmul %181, %217, %cst_100 {dimension_numbers = #tpu.dot_dimension_numbers<[1], [0], [0], [1], [0, 0, 1, 1], [], []>} : vector<8x1xf32>, vector<1x2xf32>, vector<8x2xf32> -> vector<8x2xf32>
    %219 = arith.subf %216, %218 : vector<8x2xf32>
    %cst_101 = arith.constant dense<0.000000e+00> : vector<8x32xf32>
    %220 = tpu.matmul %212, %2, %cst_101 {dimension_numbers = #tpu.dot_dimension_numbers<[1], [0], [0], [1], [0, 0, 1, 1], [], []>} : vector<8x2xf32>, vector<2x32xf32>, vector<8x32xf32> -> vector<8x32xf32>
    %cst_102 = arith.constant dense<0.000000e+00> : vector<8x32xf32>
    %221 = tpu.matmul %219, %2, %cst_102 {dimension_numbers = #tpu.dot_dimension_numbers<[1], [0], [0], [1], [0, 0, 1, 1], [], []>} : vector<8x2xf32>, vector<2x32xf32>, vector<8x32xf32> -> vector<8x32xf32>
    %222 = arith.mulf %180, %220 : vector<8x32xf32>
    %223 = arith.addf %222, %221 : vector<8x32xf32>
    %cst_103 = arith.constant 2.000000e+01 : f32
    %224 = vector.broadcast %cst_103 : f32 to vector<8x32xf32>
    %225 = arith.minimumf %223, %224 : vector<8x32xf32>
    %226 = math.exp %225 : vector<8x32xf32>
    %cst_104 = arith.constant 1.000000e+00 : f32
    %227 = vector.broadcast %cst_104 : f32 to vector<8x32xf32>
    %228 = arith.addf %227, %226 : vector<8x32xf32>
    %cst_105 = arith.constant 1.000000e+00 : f32
    %229 = vector.broadcast %cst_105 : f32 to vector<8x32xf32>
    %230 = arith.addf %229, %226 : vector<8x32xf32>
    %231 = arith.mulf %228, %230 : vector<8x32xf32>
    %cst_106 = arith.constant 1.000000e+00 : f32
    %232 = vector.broadcast %cst_106 : f32 to vector<8x32xf32>
    %233 = arith.subf %231, %232 : vector<8x32xf32>
    %234 = arith.mulf %223, %233 : vector<8x32xf32>
    %cst_107 = arith.constant 1.000000e+00 : f32
    %235 = vector.broadcast %cst_107 : f32 to vector<8x32xf32>
    %236 = arith.addf %231, %235 : vector<8x32xf32>
    %237 = tpu.reciprocal %236 {approx = true} : vector<8x32xf32> -> vector<8x32xf32>
    %238 = arith.mulf %234, %237 : vector<8x32xf32>
    %cst_108 = arith.constant 2.000000e+01 : f32
    %239 = vector.broadcast %cst_108 : f32 to vector<8x32xf32>
    %240 = arith.cmpf ogt, %223, %239 : vector<8x32xf32>
    %241 = arith.select %240, %223, %238 : vector<8x32xi1>, vector<8x32xf32>
    %c0_109 = arith.constant 0 : index
    %c0_110 = arith.constant 0 : index
    %242 = vector.load %arg12[%c0_109, %c0_110] : memref<8x4xbf16, #tpu.memory_space<vmem>>, vector<8x4xbf16>
    %243 = arith.truncf %0 : vector<4x32xf32> to vector<4x32xbf16>
    %cst_111 = arith.constant dense<0.000000e+00> : vector<8x32xf32>
    %244 = tpu.matmul %242, %243, %cst_111 {dimension_numbers = #tpu.dot_dimension_numbers<[1], [0], [0], [1], [0, 0, 1, 1], [], []>} : vector<8x4xbf16>, vector<4x32xbf16>, vector<8x32xf32> -> vector<8x32xf32>
    %245 = vector.extract_strided_slice %4 {offsets = [0, 4], sizes = [8, 1], strides = [1, 1]} : vector<8x5xf32> to vector<8x1xf32>
    %246 = vector.broadcast %245 : vector<8x1xf32> to vector<8x32xf32>
    %247 = arith.addf %244, %246 : vector<8x32xf32>
    %248 = arith.addf %241, %247 : vector<8x32xf32>
    %c0_112 = arith.constant 0 : index
    %c0_113 = arith.constant 0 : index
    %249 = vector.load %arg13[%c0_112, %c0_113] : memref<8x32xf32, #tpu.memory_space<vmem>>, vector<8x32xf32>
    tpu.vector_store %arg13[%c0_112, %c0_113], %248 {strides = array<i32>} : memref<8x32xf32, #tpu.memory_space<vmem>>, vector<8x32xf32>,
    return
  }
  func.func @transform_0(%arg0: i32) -> (i32, i32) {
    %c0_i32 = arith.constant 0 : i32
    %c0_i32_0 = arith.constant 0 : i32
    return %c0_i32, %arg0 : i32, i32
  }
  func.func @transform_1(%arg0: i32) -> (i32, i32) {
    %c0_i32 = arith.constant 0 : i32
    %c0_i32_0 = arith.constant 0 : i32
    return %c0_i32, %arg0 : i32, i32
  }
  func.func @transform_2(%arg0: i32) -> (i32, i32) {
    %c0_i32 = arith.constant 0 : i32
    %c0_i32_0 = arith.constant 0 : i32
    return %c0_i32, %arg0 : i32, i32
  }
  func.func @transform_3(%arg0: i32) -> (i32, i32, i32) {
    %c0_i32 = arith.constant 0 : i32
    %c0_i32_0 = arith.constant 0 : i32
    %c0_i32_1 = arith.constant 0 : i32
    %c0_i32_2 = arith.constant 0 : i32
    return %c0_i32, %c0_i32_0, %c0_i32_1 : i32, i32, i32
  }
  func.func @transform_4(%arg0: i32) -> (i32, i32, i32) {
    %c0_i32 = arith.constant 0 : i32
    %c0_i32_0 = arith.constant 0 : i32
    %c0_i32_1 = arith.constant 0 : i32
    %c0_i32_2 = arith.constant 0 : i32
    return %c0_i32, %c0_i32_0, %c0_i32_1 : i32, i32, i32
  }
  func.func @transform_5(%arg0: i32) -> (i32, i32) {
    %c0_i32 = arith.constant 0 : i32
    %c0_i32_0 = arith.constant 0 : i32
    %c0_i32_1 = arith.constant 0 : i32
    return %c0_i32, %c0_i32_0 : i32, i32
  }
  func.func @transform_6(%arg0: i32) -> (i32, i32) {
    %c0_i32 = arith.constant 0 : i32
    %c0_i32_0 = arith.constant 0 : i32
    %c0_i32_1 = arith.constant 0 : i32
    return %c0_i32, %c0_i32_0 : i32, i32
  }
  func.func @transform_7(%arg0: i32) -> (i32, i32) {
    %c0_i32 = arith.constant 0 : i32
    %c0_i32_0 = arith.constant 0 : i32
    %c0_i32_1 = arith.constant 0 : i32
    return %c0_i32, %c0_i32_0 : i32, i32
  }
  func.func @transform_8(%arg0: i32) -> (i32, i32) {
    %c0_i32 = arith.constant 0 : i32
    %c0_i32_0 = arith.constant 0 : i32
    %c0_i32_1 = arith.constant 0 : i32
    return %c0_i32, %c0_i32_0 : i32, i32
  }
  func.func @transform_9(%arg0: i32) -> (i32, i32) {
    %c0_i32 = arith.constant 0 : i32
    %c0_i32_0 = arith.constant 0 : i32
    %c0_i32_1 = arith.constant 0 : i32
    return %c0_i32, %c0_i32_0 : i32, i32
  }
  func.func @transform_10(%arg0: i32) -> (i32, i32) {
    %c0_i32 = arith.constant 0 : i32
    %c0_i32_0 = arith.constant 0 : i32
    %c0_i32_1 = arith.constant 0 : i32
    return %c0_i32, %c0_i32_0 : i32, i32
  }
  func.func @transform_11(%arg0: i32) -> (i32, i32) {
    %c0_i32 = arith.constant 0 : i32
    %c0_i32_0 = arith.constant 0 : i32
    %c0_i32_1 = arith.constant 0 : i32
    return %c0_i32, %c0_i32_0 : i32, i32
  }
  func.func @transform_12(%arg0: i32) -> (i32, i32) {
    %c0_i32 = arith.constant 0 : i32
    %c0_i32_0 = arith.constant 0 : i32
    return %c0_i32, %arg0 : i32, i32
  }
}

</mosaic_0001>

<llo_original>
// kernel: tpu_custom_call.1
$region0: #{tpu_custom_call.1}
  #allocation0 [shape = 'u32[]', space=smem, size = 0x4, offset = 0x4, fixed_abs, tag = 'smem constant byte address 0x4 - core index']
  #allocation1 [shape = 'u32[144,128]{1,0:T(1,128)}', space=vmem, size = 0x12000, scoped, tag = 'internal scratch']
  %s0 = inlined_call_operand.vmem [shape: f32[4,32], index: 0, kind: input, shape index: {}]
  %s1 = inlined_call_operand.vmem [shape: f32[8,2], index: 1, kind: input, shape index: {}]
  %s2 = inlined_call_operand.vmem [shape: f32[8,2], index: 2, kind: input, shape index: {}]
  %s3 = inlined_call_operand.vmem [shape: bf16[3,8,4], index: 3, kind: input, shape index: {}]
  %s4 = inlined_call_operand.vmem [shape: bf16[3,8,8], index: 4, kind: input, shape index: {}]
  %s5 = inlined_call_operand.vmem [shape: f32[8,5], index: 5, kind: input, shape index: {}]
  %s6 = inlined_call_operand.vmem [shape: f32[1,8], index: 6, kind: input, shape index: {}]
  %s7 = inlined_call_operand.vmem [shape: f32[8,1], index: 7, kind: input, shape index: {}]
  %s8 = inlined_call_operand.vmem [shape: f32[8,1], index: 8, kind: input, shape index: {}]
  %s9 = inlined_call_operand.vmem [shape: f32[32,2], index: 9, kind: input, shape index: {}]
  %s10 = inlined_call_operand.vmem [shape: f32[2,32], index: 10, kind: input, shape index: {}]
  %s11 = inlined_call_operand.vmem [shape: bf16[8,4], index: 11, kind: input, shape index: {}]
  %s12 = inlined_call_operand.hbm [shape: f32[8,32], index: 12, kind: output, shape index: {}]
  %s13 = sld [smem:[#allocation0]]
  $region58: #{tpu_custom_call.1} parent=0
    _
  %s15 = ssub.s32 1, %s13
  %s16 = scalar_select 0, %s15, %s13
  $region1: #{tpu_custom_call.1} parent=0
    #allocation2 [shape = 'u8[4096]{0}', space=vmem, size = 0x1000, scoped, tag = 'output window, operand 0, single buffered']
    #allocation3 [shape = 's32[1]{0}', space=sflag, size = 0x4, scoped, tag = 'scoped memory for tpu_custom_call.1']
    %17 = vsyncpa [#allocation3], 0
    // Predicated region
    $region2: #{tpu_custom_call.1} parent=1 // pred_check
      _
    $region3: #{tpu_custom_call.1} parent=1 // pred_check_branch
      %19 = sbr.rel (0) target = $region5
    $region4: #{tpu_custom_call.1} parent=1 // pred_region
      _
    $region5: #{tpu_custom_call.1} parent=1 // pred_fallthru
      _
    // Predicated region
    $region6: #{tpu_custom_call.1} parent=1 // pred_check
      _
    $region7: #{tpu_custom_call.1} parent=1 // pred_check_branch
      %21 = sbr.rel (0) target = $region9
    $region8: #{tpu_custom_call.1} parent=1 // pred_region
      _
    $region9: #{tpu_custom_call.1} parent=1 // pred_fallthru
      _
    // Predicated region
    $region10: #{tpu_custom_call.1} parent=1 // pred_check
      _
    $region11: #{tpu_custom_call.1} parent=1 // pred_check_branch
      %23 = sbr.rel (0) target = $region13
    $region12: #{tpu_custom_call.1} parent=1 // pred_region
      _
    $region13: #{tpu_custom_call.1} parent=1 // pred_fallthru
      _
    // Predicated region
    $region14: #{tpu_custom_call.1} parent=1 // pred_check
      _
    $region15: #{tpu_custom_call.1} parent=1 // pred_check_branch
      %25 = sbr.rel (0) target = $region17
    $region16: #{tpu_custom_call.1} parent=1 // pred_region
      _
    $region17: #{tpu_custom_call.1} parent=1 // pred_fallthru
      _
    // Predicated region
    $region18: #{tpu_custom_call.1} parent=1 // pred_check
      _
    $region19: #{tpu_custom_call.1} parent=1 // pred_check_branch
      %27 = sbr.rel (0) target = $region21
    $region20: #{tpu_custom_call.1} parent=1 // pred_region
      _
    $region21: #{tpu_custom_call.1} parent=1 // pred_fallthru
      _
    // Predicated region
    $region22: #{tpu_custom_call.1} parent=1 // pred_check
      _
    $region23: #{tpu_custom_call.1} parent=1 // pred_check_branch
      %29 = sbr.rel (0) target = $region25
    $region24: #{tpu_custom_call.1} parent=1 // pred_region
      _
    $region25: #{tpu_custom_call.1} parent=1 // pred_fallthru
      _
    // Predicated region
    $region26: #{tpu_custom_call.1} parent=1 // pred_check
      _
    $region27: #{tpu_custom_call.1} parent=1 // pred_check_branch
      %31 = sbr.rel (0) target = $region29
    $region28: #{tpu_custom_call.1} parent=1 // pred_region
      _
    $region29: #{tpu_custom_call.1} parent=1 // pred_fallthru
      _
    // Predicated region
    $region30: #{tpu_custom_call.1} parent=1 // pred_check
      _
    $region31: #{tpu_custom_call.1} parent=1 // pred_check_branch
      %33 = sbr.rel (0) target = $region33
    $region32: #{tpu_custom_call.1} parent=1 // pred_region
      _
    $region33: #{tpu_custom_call.1} parent=1 // pred_fallthru
      _
    // Predicated region
    $region34: #{tpu_custom_call.1} parent=1 // pred_check
      _
    $region35: #{tpu_custom_call.1} parent=1 // pred_check_branch
      %35 = sbr.rel (0) target = $region37
    $region36: #{tpu_custom_call.1} parent=1 // pred_region
      _
    $region37: #{tpu_custom_call.1} parent=1 // pred_fallthru
      _
    // Predicated region
    $region38: #{tpu_custom_call.1} parent=1 // pred_check
      _
    $region39: #{tpu_custom_call.1} parent=1 // pred_check_branch
      %37 = sbr.rel (0) target = $region41
    $region40: #{tpu_custom_call.1} parent=1 // pred_region
      _
    $region41: #{tpu_custom_call.1} parent=1 // pred_fallthru
      _
    // Predicated region
    $region42: #{tpu_custom_call.1} parent=1 // pred_check
      _
    $region43: #{tpu_custom_call.1} parent=1 // pred_check_branch
      %39 = sbr.rel (0) target = $region45
    $region44: #{tpu_custom_call.1} parent=1 // pred_region
      _
    $region45: #{tpu_custom_call.1} parent=1 // pred_fallthru
      _
    // Predicated region
    $region46: #{tpu_custom_call.1} parent=1 // pred_check
      _
    $region47: #{tpu_custom_call.1} parent=1 // pred_check_branch
      %41 = sbr.rel (0) target = $region49
    $region48: #{tpu_custom_call.1} parent=1 // pred_region
      _
    $region49: #{tpu_custom_call.1} parent=1 // pred_fallthru
      _
    %v43 = vld [vmem:[%s0] sm:$0xf]
    %v44 = vld [vmem:[%s9] sm:$0xff]
    %v45 = vld [vmem:[%s9 + $0x8] sm:$0xff]
    %v46 = vld [vmem:[%s9 + $0x10] sm:$0xff]
    %v47 = vld [vmem:[%s9 + $0x18] sm:$0xff]
    %v48 = vld [vmem:[%s10] sm:$0x3]
    %v49 = vld [vmem:[%s6] sm:$0x1]
    %v50 = vld [vmem:[%s5] sm:$0xff]
    %v51 = vlaneseq
    %v52 = vand.u32 %v51, 127
    %vm53 = vcmp.lt.s32.totalorder %v52, 0
    %v54 = vsub.s32 0, %v52
    %v55 = vsel %vm53, %v54, %v52
    %v56 = vshrl.u32 %v55, 4
    %v57 = vand.u32 %v55, 15
    %v58 = vsub.s32 0, %v57
    %v59 = vsel %vm53, %v58, %v57
    %vm60 = vcmp.ne.s32.totalorder %v59, 0
    %vm61 = vcmp.lt.s32.totalorder %v59, 0
    %vm62 = vmand %vm61, %vm60
    %v63 = vadd.s32 %v59, 16
    %v64 = vsel %vm62, %v63, %v59
    %vm65 = vcmask 1047808
    %66 = vrot.lane.b32.xlu0 %v43, 32
    %v67 = vpop.permute.xlu0 %66
    %v68 = vsel %vm65, %v67, %v43
    %69 = vrot.lane.b32.xlu0 %v68, 32
    %v70 = vpop.permute.xlu0 %69
    %v71 = vsel %vm65, %v70, %v43
    %v72 = vadd.s32 %v64, 4294967295
    %vm73 = vcmp.ge.s32.totalorder %v72, 0
    %vm74 = vcmp.lt.s32.totalorder %v72, 16
    %vm75 = vmand %vm73, %vm74
    %v76 = vsel %vm75, 1, 0
    %vm77 = vcmp.eq.s32.totalorder %v76, 1
    %79 = vrot.lane.b32.xlu0 %v71, 97
    %v80 = vpop.permute.xlu0 %79
    %v82 = vsel %vm77, %v80, 0.0
    %v83 = vld [vmem:[%s3] sm:$0xf]
    %v84 = vpack.c.bf16 %v82, %v82
    %s85 = scalar_lea.vmem %s3, 4
    %v86 = vld [vmem:[%s85] sm:$0xf]
    %v87 = vpack.c.bf16 %v43, %v43
    %vm88 = vcmask 31744
    %v90 = vsel %vm88, %v86, 0
    %vm92 = vcmask 1041408
    %v94 = vsel %vm92, %v87, 0
    %96 = vmatprep.subr.bf16.mxu0 0
    %97 = vmatpush1.bf16.msra.mxu0 %v94
    %98 = vmatprep.subr.bf16.mxu0 0
    %99 = vmatpush1.bf16.msra.mxu0 0
    %100 = vmatprep.subr.bf16.mxu0 0
    %101 = vmatpush1.bf16.msra.mxu0 0
    %102 = vmatprep.subr.bf16.mxu0 0
    %103 = vmatpush1.bf16.msra.mxu0 0
    %104 = vmatprep.subr.bf16.mxu0 0
    %105 = vmatpush1.bf16.msra.mxu0 0
    %106 = vmatprep.subr.bf16.mxu0 0
    %107 = vmatpush1.bf16.msra.mxu0 0
    %108 = vmatprep.subr.bf16.mxu0 0
    %109 = vmatpush1.bf16.msra.mxu0 0
    %110 = vmatprep.subr.bf16.mxu0 0
    %111 = vmatpush1.bf16.msra.mxu0 0
    %112 = vmatprep.subr.bf16.mxu0 0
    %113 = vmatpush1.bf16.msra.mxu0 0
    %114 = vmatprep.subr.bf16.mxu0 0
    %115 = vmatpush1.bf16.msra.mxu0 0
    %116 = vmatprep.subr.bf16.mxu0 0
    %117 = vmatpush1.bf16.msra.mxu0 0
    %118 = vmatprep.subr.bf16.mxu0 0
    %119 = vmatpush1.bf16.msra.mxu0 0
    %120 = vmatprep.subr.bf16.mxu0 0
    %121 = vmatpush1.bf16.msra.mxu0 0
    %122 = vmatprep.subr.bf16.mxu0 0
    %123 = vmatpush1.bf16.msra.mxu0 0
    %124 = vmatprep.subr.bf16.mxu0 0
    %125 = vmatpush1.bf16.msra.mxu0 0
    %126 = vmatprep.subr.bf16.mxu0 0
    %127 = vmatpush1.bf16.msra.mxu0 0
    %128 = vmatprep.mubr.bf16.mxu0 0
    %129 = vmatmul.mubr.bf16.gmra.mrb[0].mxu0 %v90
    %v130 = vpop.f32.mrb[0].mxu0
    %v131 = vadd.f32 0.0, %v130
    %v132 = vpop.f32.mrb[0].mxu0
    %v133 = vpop.f32.mrb[0].mxu0
    %v134 = vpop.f32.mrb[0].mxu0
    %135 = vdwg.mxu0
    %v137 = vsel %vm88, %v83, 0
    %v140 = vsel %vm92, %v84, 0
    %142 = vmatprep.subr.bf16.mxu0 0
    %143 = vmatpush1.bf16.msra.mxu0 %v140
    %144 = vmatprep.subr.bf16.mxu0 0
    %145 = vmatpush1.bf16.msra.mxu0 0
    %146 = vmatprep.subr.bf16.mxu0 0
    %147 = vmatpush1.bf16.msra.mxu0 0
    %148 = vmatprep.subr.bf16.mxu0 0
    %149 = vmatpush1.bf16.msra.mxu0 0
    %150 = vmatprep.subr.bf16.mxu0 0
    %151 = vmatpush1.bf16.msra.mxu0 0
    %152 = vmatprep.subr.bf16.mxu0 0
    %153 = vmatpush1.bf16.msra.mxu0 0
    %154 = vmatprep.subr.bf16.mxu0 0
    %155 = vmatpush1.bf16.msra.mxu0 0
    %156 = vmatprep.subr.bf16.mxu0 0
    %157 = vmatpush1.bf16.msra.mxu0 0
    %158 = vmatprep.subr.bf16.mxu0 0
    %159 = vmatpush1.bf16.msra.mxu0 0
    %160 = vmatprep.subr.bf16.mxu0 0
    %161 = vmatpush1.bf16.msra.mxu0 0
    %162 = vmatprep.subr.bf16.mxu0 0
    %163 = vmatpush1.bf16.msra.mxu0 0
    %164 = vmatprep.subr.bf16.mxu0 0
    %165 = vmatpush1.bf16.msra.mxu0 0
    %166 = vmatprep.subr.bf16.mxu0 0
    %167 = vmatpush1.bf16.msra.mxu0 0
    %168 = vmatprep.subr.bf16.mxu0 0
    %169 = vmatpush1.bf16.msra.mxu0 0
    %170 = vmatprep.subr.bf16.mxu0 0
    %171 = vmatpush1.bf16.msra.mxu0 0
    %172 = vmatprep.subr.bf16.mxu0 0
    %173 = vmatpush1.bf16.msra.mxu0 0
    %174 = vmatprep.mubr.bf16.mxu0 0
    %175 = vmatmul.mubr.bf16.gmra.mrb[0].mxu0 %v137
    %v176 = vpop.f32.mrb[0].mxu0
    %v177 = vadd.f32 %v131, %v176
    %v178 = vpop.f32.mrb[0].mxu0
    %v179 = vpop.f32.mrb[0].mxu0
    %v180 = vpop.f32.mrb[0].mxu0
    %181 = vdwg.mxu0
    %v182 = vadd.s32 %v64, 1
    %vm183 = vcmp.ge.s32.totalorder %v182, 0
    %vm184 = vcmp.lt.s32.totalorder %v182, 16
    %vm185 = vmand %vm183, %vm184
    %v186 = vsel %vm185, 1, 0
    %vm187 = vcmp.eq.s32.totalorder %v186, 1
    %188 = vrot.lane.b32.xlu0 %v71, 127
    %v189 = vpop.permute.xlu0 %188
    %v191 = vsel %vm187, %v189, 0.0
    %s192 = scalar_lea.vmem %s3, 8
    %v193 = vld [vmem:[%s192] sm:$0xf]
    %v194 = vpack.c.bf16 %v191, %v191
    %v196 = vsel %vm88, %v193, 0
    %v199 = vsel %vm92, %v194, 0
    %201 = vmatprep.subr.bf16.mxu0 0
    %202 = vmatpush1.bf16.msra.mxu0 %v199
    %203 = vmatprep.subr.bf16.mxu0 0
    %204 = vmatpush1.bf16.msra.mxu0 0
    %205 = vmatprep.subr.bf16.mxu0 0
    %206 = vmatpush1.bf16.msra.mxu0 0
    %207 = vmatprep.subr.bf16.mxu0 0
    %208 = vmatpush1.bf16.msra.mxu0 0
    %209 = vmatprep.subr.bf16.mxu0 0
    %210 = vmatpush1.bf16.msra.mxu0 0
    %211 = vmatprep.subr.bf16.mxu0 0
    %212 = vmatpush1.bf16.msra.mxu0 0
    %213 = vmatprep.subr.bf16.mxu0 0
    %214 = vmatpush1.bf16.msra.mxu0 0
    %215 = vmatprep.subr.bf16.mxu0 0
    %216 = vmatpush1.bf16.msra.mxu0 0
    %217 = vmatprep.subr.bf16.mxu0 0
    %218 = vmatpush1.bf16.msra.mxu0 0
    %219 = vmatprep.subr.bf16.mxu0 0
    %220 = vmatpush1.bf16.msra.mxu0 0
    %221 = vmatprep.subr.bf16.mxu0 0
    %222 = vmatpush1.bf16.msra.mxu0 0
    %223 = vmatprep.subr.bf16.mxu0 0
    %224 = vmatpush1.bf16.msra.mxu0 0
    %225 = vmatprep.subr.bf16.mxu0 0
    %226 = vmatpush1.bf16.msra.mxu0 0
    %227 = vmatprep.subr.bf16.mxu0 0
    %228 = vmatpush1.bf16.msra.mxu0 0
    %229 = vmatprep.subr.bf16.mxu0 0
    %230 = vmatpush1.bf16.msra.mxu0 0
    %231 = vmatprep.subr.bf16.mxu0 0
    %232 = vmatpush1.bf16.msra.mxu0 0
    %233 = vmatprep.mubr.bf16.mxu0 0
    %234 = vmatmul.mubr.bf16.gmra.mrb[0].mxu0 %v196
    %v235 = vpop.f32.mrb[0].mxu0
    %v236 = vadd.f32 0.0, %v235
    %v237 = vpop.f32.mrb[0].mxu0
    %v238 = vpop.f32.mrb[0].mxu0
    %v239 = vpop.f32.mrb[0].mxu0
    %240 = vdwg.mxu0
    %v241 = vadd.f32 %v177, %v236
    %v242 = vld [vmem:[%s7] sm:$0xff]
    %vm243 = vcmask 261120
    %v245 = vsel %vm243, %v241, 0
    %247 = vmatprep.subr.mxu0 0.0
    %248 = vmatpush1.msra.mxu0 %v44
    %249 = vmatprep.subr.mxu0 0.0
    %250 = vmatpush1.msra.mxu0 %v45
    %251 = vmatprep.subr.mxu0 0.0
    %252 = vmatpush1.msra.mxu0 %v46
    %253 = vmatprep.subr.mxu0 0.0
    %254 = vmatpush1.msra.mxu0 %v47
    %255 = vmatprep.subr.mxu0 0.0
    %256 = vmatpush1.msra.mxu0 0.0
    %257 = vmatprep.subr.mxu0 0.0
    %258 = vmatpush1.msra.mxu0 0.0
    %259 = vmatprep.subr.mxu0 0.0
    %260 = vmatpush1.msra.mxu0 0.0
    %261 = vmatprep.subr.mxu0 0.0
    %262 = vmatpush1.msra.mxu0 0.0
    %263 = vmatprep.subr.mxu0 0.0
    %264 = vmatpush1.msra.mxu0 0.0
    %265 = vmatprep.subr.mxu0 0.0
    %266 = vmatpush1.msra.mxu0 0.0
    %267 = vmatprep.subr.mxu0 0.0
    %268 = vmatpush1.msra.mxu0 0.0
    %269 = vmatprep.subr.mxu0 0.0
    %270 = vmatpush1.msra.mxu0 0.0
    %271 = vmatprep.subr.mxu0 0.0
    %272 = vmatpush1.msra.mxu0 0.0
    %273 = vmatprep.subr.mxu0 0.0
    %274 = vmatpush1.msra.mxu0 0.0
    %275 = vmatprep.subr.mxu0 0.0
    %276 = vmatpush1.msra.mxu0 0.0
    %277 = vmatprep.subr.mxu0 0.0
    %278 = vmatpush1.msra.mxu0 0.0
    %279 = vmatprep.subr.mxu0 0.0
    %280 = vmatpush1.msra.mxu0 0.0
    %281 = vmatprep.subr.mxu0 0.0
    %282 = vmatpush1.msra.mxu0 0.0
    %283 = vmatprep.subr.mxu0 0.0
    %284 = vmatpush1.msra.mxu0 0.0
    %285 = vmatprep.subr.mxu0 0.0
    %286 = vmatpush1.msra.mxu0 0.0
    %287 = vmatprep.subr.mxu0 0.0
    %288 = vmatpush1.msra.mxu0 0.0
    %289 = vmatprep.subr.mxu0 0.0
    %290 = vmatpush1.msra.mxu0 0.0
    %291 = vmatprep.subr.mxu0 0.0
    %292 = vmatpush1.msra.mxu0 0.0
    %293 = vmatprep.subr.mxu0 0.0
    %294 = vmatpush1.msra.mxu0 0.0
    %295 = vmatprep.subr.mxu0 0.0
    %296 = vmatpush1.msra.mxu0 0.0
    %297 = vmatprep.subr.mxu0 0.0
    %298 = vmatpush1.msra.mxu0 0.0
    %299 = vmatprep.subr.mxu0 0.0
    %300 = vmatpush1.msra.mxu0 0.0
    %301 = vmatprep.subr.mxu0 0.0
    %302 = vmatpush1.msra.mxu0 0.0
    %303 = vmatprep.subr.mxu0 0.0
    %304 = vmatpush1.msra.mxu0 0.0
    %305 = vmatprep.subr.mxu0 0.0
    %306 = vmatpush1.msra.mxu0 0.0
    %307 = vmatprep.subr.mxu0 0.0
    %308 = vmatpush1.msra.mxu0 0.0
    %309 = vmatprep.subr.mxu0 0.0
    %310 = vmatpush1.msra.mxu0 0.0
    %311 = vmatprep.mubr.f32.mxu0 0.0
    %312 = vmatmul.mubr.f32.gmra.mrb[0].mxu0 %v245
    %v313 = vpop.f32.mrb[0].mxu0
    %v314 = vadd.f32 0.0, %v313
    %v315 = vpop.f32.mrb[0].mxu0
    %316 = vdwg.mxu0
    %v317 = vmul.f32 %v241, %v241
    %v318 = vmul.f32 %v50, 16.0
    %320 = vset.pattern.permute.xlu0 0
    %321 = vperm.xlu0 %320, %v318
    %v322 = vpop.permute.xlu0 %321
    %v324 = vadd.f32 %v314, %v322
    %v325 = vmul.f32 %v50, 2.0
    %327 = vset.pattern.permute.xlu0 0
    %328 = vperm.xlu0 %327, %v325
    %v329 = vpop.permute.xlu0 %328
    %v331 = vmul.f32 %v329, %v314
    %v333 = vsel %vm243, %v317, 0
    %335 = vmatprep.subr.mxu0 0.0
    %336 = vmatpush1.msra.mxu0 %v44
    %337 = vmatprep.subr.mxu0 0.0
    %338 = vmatpush1.msra.mxu0 %v45
    %339 = vmatprep.subr.mxu0 0.0
    %340 = vmatpush1.msra.mxu0 %v46
    %341 = vmatprep.subr.mxu0 0.0
    %342 = vmatpush1.msra.mxu0 %v47
    %343 = vmatprep.subr.mxu0 0.0
    %344 = vmatpush1.msra.mxu0 0.0
    %345 = vmatprep.subr.mxu0 0.0
    %346 = vmatpush1.msra.mxu0 0.0
    %347 = vmatprep.subr.mxu0 0.0
    %348 = vmatpush1.msra.mxu0 0.0
    %349 = vmatprep.subr.mxu0 0.0
    %350 = vmatpush1.msra.mxu0 0.0
    %351 = vmatprep.subr.mxu0 0.0
    %352 = vmatpush1.msra.mxu0 0.0
    %353 = vmatprep.subr.mxu0 0.0
    %354 = vmatpush1.msra.mxu0 0.0
    %355 = vmatprep.subr.mxu0 0.0
    %356 = vmatpush1.msra.mxu0 0.0
    %357 = vmatprep.subr.mxu0 0.0
    %358 = vmatpush1.msra.mxu0 0.0
    %359 = vmatprep.subr.mxu0 0.0
    %360 = vmatpush1.msra.mxu0 0.0
    %361 = vmatprep.subr.mxu0 0.0
    %362 = vmatpush1.msra.mxu0 0.0
    %363 = vmatprep.subr.mxu0 0.0
    %364 = vmatpush1.msra.mxu0 0.0
    %365 = vmatprep.subr.mxu0 0.0
    %366 = vmatpush1.msra.mxu0 0.0
    %367 = vmatprep.subr.mxu0 0.0
    %368 = vmatpush1.msra.mxu0 0.0
    %369 = vmatprep.subr.mxu0 0.0
    %370 = vmatpush1.msra.mxu0 0.0
    %371 = vmatprep.subr.mxu0 0.0
    %372 = vmatpush1.msra.mxu0 0.0
    %373 = vmatprep.subr.mxu0 0.0
    %374 = vmatpush1.msra.mxu0 0.0
    %375 = vmatprep.subr.mxu0 0.0
    %376 = vmatpush1.msra.mxu0 0.0
    %377 = vmatprep.subr.mxu0 0.0
    %378 = vmatpush1.msra.mxu0 0.0
    %379 = vmatprep.subr.mxu0 0.0
    %380 = vmatpush1.msra.mxu0 0.0
    %381 = vmatprep.subr.mxu0 0.0
    %382 = vmatpush1.msra.mxu0 0.0
    %383 = vmatprep.subr.mxu0 0.0
    %384 = vmatpush1.msra.mxu0 0.0
    %385 = vmatprep.subr.mxu0 0.0
    %386 = vmatpush1.msra.mxu0 0.0
    %387 = vmatprep.subr.mxu0 0.0
    %388 = vmatpush1.msra.mxu0 0.0
    %389 = vmatprep.subr.mxu0 0.0
    %390 = vmatpush1.msra.mxu0 0.0
    %391 = vmatprep.subr.mxu0 0.0
    %392 = vmatpush1.msra.mxu0 0.0
    %393 = vmatprep.subr.mxu0 0.0
    %394 = vmatpush1.msra.mxu0 0.0
    %395 = vmatprep.subr.mxu0 0.0
    %396 = vmatpush1.msra.mxu0 0.0
    %397 = vmatprep.subr.mxu0 0.0
    %398 = vmatpush1.msra.mxu0 0.0
    %399 = vmatprep.mubr.f32.mxu0 0.0
    %400 = vmatmul.mubr.f32.gmra.mrb[0].mxu0 %v333
    %v401 = vpop.f32.mrb[0].mxu0
    %v402 = vadd.f32 %v331, %v401
    %v403 = vpop.f32.mrb[0].mxu0
    %404 = vdwg.mxu0
    %v405 = vmul.f32 %v50, %v50
    %v406 = vmul.f32 %v405, 16.0
    %408 = vset.pattern.permute.xlu0 0
    %409 = vperm.xlu0 %408, %v406
    %v410 = vpop.permute.xlu0 %409
    %v412 = vadd.f32 %v402, %v410
    %vm413 = vcmask 64512
    %v415 = vsel %vm413, %v49, 0
    %417 = vmatprep.subr.mxu0 0.0
    %418 = vmatpush1.msra.mxu0 %v324
    %419 = vmatprep.subr.mxu0 0.0
    %420 = vmatpush1.msra.mxu0 0.0
    %421 = vmatprep.subr.mxu0 0.0
    %422 = vmatpush1.msra.mxu0 0.0
    %423 = vmatprep.subr.mxu0 0.0
    %424 = vmatpush1.msra.mxu0 0.0
    %425 = vmatprep.subr.mxu0 0.0
    %426 = vmatpush1.msra.mxu0 0.0
    %427 = vmatprep.subr.mxu0 0.0
    %428 = vmatpush1.msra.mxu0 0.0
    %429 = vmatprep.subr.mxu0 0.0
    %430 = vmatpush1.msra.mxu0 0.0
    %431 = vmatprep.subr.mxu0 0.0
    %432 = vmatpush1.msra.mxu0 0.0
    %433 = vmatprep.subr.mxu0 0.0
    %434 = vmatpush1.msra.mxu0 0.0
    %435 = vmatprep.subr.mxu0 0.0
    %436 = vmatpush1.msra.mxu0 0.0
    %437 = vmatprep.subr.mxu0 0.0
    %438 = vmatpush1.msra.mxu0 0.0
    %439 = vmatprep.subr.mxu0 0.0
    %440 = vmatpush1.msra.mxu0 0.0
    %441 = vmatprep.subr.mxu0 0.0
    %442 = vmatpush1.msra.mxu0 0.0
    %443 = vmatprep.subr.mxu0 0.0
    %444 = vmatpush1.msra.mxu0 0.0
    %445 = vmatprep.subr.mxu0 0.0
    %446 = vmatpush1.msra.mxu0 0.0
    %447 = vmatprep.subr.mxu0 0.0
    %448 = vmatpush1.msra.mxu0 0.0
    %449 = vmatprep.subr.mxu0 0.0
    %450 = vmatpush1.msra.mxu0 0.0
    %451 = vmatprep.subr.mxu0 0.0
    %452 = vmatpush1.msra.mxu0 0.0
    %453 = vmatprep.subr.mxu0 0.0
    %454 = vmatpush1.msra.mxu0 0.0
    %455 = vmatprep.subr.mxu0 0.0
    %456 = vmatpush1.msra.mxu0 0.0
    %457 = vmatprep.subr.mxu0 0.0
    %458 = vmatpush1.msra.mxu0 0.0
    %459 = vmatprep.subr.mxu0 0.0
    %460 = vmatpush1.msra.mxu0 0.0
    %461 = vmatprep.subr.mxu0 0.0
    %462 = vmatpush1.msra.mxu0 0.0
    %463 = vmatprep.subr.mxu0 0.0
    %464 = vmatpush1.msra.mxu0 0.0
    %465 = vmatprep.subr.mxu0 0.0
    %466 = vmatpush1.msra.mxu0 0.0
    %467 = vmatprep.subr.mxu0 0.0
    %468 = vmatpush1.msra.mxu0 0.0
    %469 = vmatprep.subr.mxu0 0.0
    %470 = vmatpush1.msra.mxu0 0.0
    %471 = vmatprep.subr.mxu0 0.0
    %472 = vmatpush1.msra.mxu0 0.0
    %473 = vmatprep.subr.mxu0 0.0
    %474 = vmatpush1.msra.mxu0 0.0
    %475 = vmatprep.subr.mxu0 0.0
    %476 = vmatpush1.msra.mxu0 0.0
    %477 = vmatprep.subr.mxu0 0.0
    %478 = vmatpush1.msra.mxu0 0.0
    %479 = vmatprep.subr.mxu0 0.0
    %480 = vmatpush1.msra.mxu0 0.0
    %481 = vmatprep.mubr.f32.mxu0 0.0
    %482 = vmatmul.mubr.f32.gmra.mrb[0].mxu0 %v415
    %v483 = vpop.f32.mrb[0].mxu0
    %v484 = vadd.f32 0.0, %v483
    %v485 = vpop.f32.mrb[0].mxu0
    %486 = vdwg.mxu0
    %v487 = vmul.f32 %v484, 0.0078125
    %488 = vmatprep.subr.mxu0 0.0
    %489 = vmatpush1.msra.mxu0 %v412
    %490 = vmatprep.subr.mxu0 0.0
    %491 = vmatpush1.msra.mxu0 0.0
    %492 = vmatprep.subr.mxu0 0.0
    %493 = vmatpush1.msra.mxu0 0.0
    %494 = vmatprep.subr.mxu0 0.0
    %495 = vmatpush1.msra.mxu0 0.0
    %496 = vmatprep.subr.mxu0 0.0
    %497 = vmatpush1.msra.mxu0 0.0
    %498 = vmatprep.subr.mxu0 0.0
    %499 = vmatpush1.msra.mxu0 0.0
    %500 = vmatprep.subr.mxu0 0.0
    %501 = vmatpush1.msra.mxu0 0.0
    %502 = vmatprep.subr.mxu0 0.0
    %503 = vmatpush1.msra.mxu0 0.0
    %504 = vmatprep.subr.mxu0 0.0
    %505 = vmatpush1.msra.mxu0 0.0
    %506 = vmatprep.subr.mxu0 0.0
    %507 = vmatpush1.msra.mxu0 0.0
    %508 = vmatprep.subr.mxu0 0.0
    %509 = vmatpush1.msra.mxu0 0.0
    %510 = vmatprep.subr.mxu0 0.0
    %511 = vmatpush1.msra.mxu0 0.0
    %512 = vmatprep.subr.mxu0 0.0
    %513 = vmatpush1.msra.mxu0 0.0
    %514 = vmatprep.subr.mxu0 0.0
    %515 = vmatpush1.msra.mxu0 0.0
    %516 = vmatprep.subr.mxu0 0.0
    %517 = vmatpush1.msra.mxu0 0.0
    %518 = vmatprep.subr.mxu0 0.0
    %519 = vmatpush1.msra.mxu0 0.0
    %520 = vmatprep.subr.mxu0 0.0
    %521 = vmatpush1.msra.mxu0 0.0
    %522 = vmatprep.subr.mxu0 0.0
    %523 = vmatpush1.msra.mxu0 0.0
    %524 = vmatprep.subr.mxu0 0.0
    %525 = vmatpush1.msra.mxu0 0.0
    %526 = vmatprep.subr.mxu0 0.0
    %527 = vmatpush1.msra.mxu0 0.0
    %528 = vmatprep.subr.mxu0 0.0
    %529 = vmatpush1.msra.mxu0 0.0
    %530 = vmatprep.subr.mxu0 0.0
    %531 = vmatpush1.msra.mxu0 0.0
    %532 = vmatprep.subr.mxu0 0.0
    %533 = vmatpush1.msra.mxu0 0.0
    %534 = vmatprep.subr.mxu0 0.0
    %535 = vmatpush1.msra.mxu0 0.0
    %536 = vmatprep.subr.mxu0 0.0
    %537 = vmatpush1.msra.mxu0 0.0
    %538 = vmatprep.subr.mxu0 0.0
    %539 = vmatpush1.msra.mxu0 0.0
    %540 = vmatprep.subr.mxu0 0.0
    %541 = vmatpush1.msra.mxu0 0.0
    %542 = vmatprep.subr.mxu0 0.0
    %543 = vmatpush1.msra.mxu0 0.0
    %544 = vmatprep.subr.mxu0 0.0
    %545 = vmatpush1.msra.mxu0 0.0
    %546 = vmatprep.subr.mxu0 0.0
    %547 = vmatpush1.msra.mxu0 0.0
    %548 = vmatprep.subr.mxu0 0.0
    %549 = vmatpush1.msra.mxu0 0.0
    %550 = vmatprep.subr.mxu0 0.0
    %551 = vmatpush1.msra.mxu0 0.0
    %552 = vmatprep.mubr.f32.mxu0 0.0
    %553 = vmatmul.mubr.f32.gmra.mrb[0].mxu0 %v415
    %v554 = vpop.f32.mrb[0].mxu0
    %v555 = vadd.f32 0.0, %v554
    %v556 = vpop.f32.mrb[0].mxu0
    %557 = vdwg.mxu0
    %v558 = vmul.f32 %v555, 0.0078125
    %v559 = vmul.f32 %v487, %v487
    %v560 = vsub.f32 %v558, %v559
    %v561 = vmax.f32 %v560, 0.0
    %v562 = vadd.f32 %v561, 1e-05
    %v563 = vrsqrt.pop %v562
    %vm564 = vcmask 7168
    %v566 = vsel %vm564, %v242, 0
    %vm568 = vcmask 1040384
    %v570 = vsel %vm568, %v563, 0
    %572 = vmatprep.subr.mxu0 0.0
    %573 = vmatpush1.msra.mxu0 %v570
    %574 = vmatprep.subr.mxu0 0.0
    %575 = vmatpush1.msra.mxu0 0.0
    %576 = vmatprep.subr.mxu0 0.0
    %577 = vmatpush1.msra.mxu0 0.0
    %578 = vmatprep.subr.mxu0 0.0
    %579 = vmatpush1.msra.mxu0 0.0
    %580 = vmatprep.subr.mxu0 0.0
    %581 = vmatpush1.msra.mxu0 0.0
    %582 = vmatprep.subr.mxu0 0.0
    %583 = vmatpush1.msra.mxu0 0.0
    %584 = vmatprep.subr.mxu0 0.0
    %585 = vmatpush1.msra.mxu0 0.0
    %586 = vmatprep.subr.mxu0 0.0
    %587 = vmatpush1.msra.mxu0 0.0
    %588 = vmatprep.subr.mxu0 0.0
    %589 = vmatpush1.msra.mxu0 0.0
    %590 = vmatprep.subr.mxu0 0.0
    %591 = vmatpush1.msra.mxu0 0.0
    %592 = vmatprep.subr.mxu0 0.0
    %593 = vmatpush1.msra.mxu0 0.0
    %594 = vmatprep.subr.mxu0 0.0
    %595 = vmatpush1.msra.mxu0 0.0
    %596 = vmatprep.subr.mxu0 0.0
    %597 = vmatpush1.msra.mxu0 0.0
    %598 = vmatprep.subr.mxu0 0.0
    %599 = vmatpush1.msra.mxu0 0.0
    %600 = vmatprep.subr.mxu0 0.0
    %601 = vmatpush1.msra.mxu0 0.0
    %602 = vmatprep.subr.mxu0 0.0
    %603 = vmatpush1.msra.mxu0 0.0
    %604 = vmatprep.subr.mxu0 0.0
    %605 = vmatpush1.msra.mxu0 0.0
    %606 = vmatprep.subr.mxu0 0.0
    %607 = vmatpush1.msra.mxu0 0.0
    %608 = vmatprep.subr.mxu0 0.0
    %609 = vmatpush1.msra.mxu0 0.0
    %610 = vmatprep.subr.mxu0 0.0
    %611 = vmatpush1.msra.mxu0 0.0
    %612 = vmatprep.subr.mxu0 0.0
    %613 = vmatpush1.msra.mxu0 0.0
    %614 = vmatprep.subr.mxu0 0.0
    %615 = vmatpush1.msra.mxu0 0.0
    %616 = vmatprep.subr.mxu0 0.0
    %617 = vmatpush1.msra.mxu0 0.0
    %618 = vmatprep.subr.mxu0 0.0
    %619 = vmatpush1.msra.mxu0 0.0
    %620 = vmatprep.subr.mxu0 0.0
    %621 = vmatpush1.msra.mxu0 0.0
    %622 = vmatprep.subr.mxu0 0.0
    %623 = vmatpush1.msra.mxu0 0.0
    %624 = vmatprep.subr.mxu0 0.0
    %625 = vmatpush1.msra.mxu0 0.0
    %626 = vmatprep.subr.mxu0 0.0
    %627 = vmatpush1.msra.mxu0 0.0
    %628 = vmatprep.subr.mxu0 0.0
    %629 = vmatpush1.msra.mxu0 0.0
    %630 = vmatprep.subr.mxu0 0.0
    %631 = vmatpush1.msra.mxu0 0.0
    %632 = vmatprep.subr.mxu0 0.0
    %633 = vmatpush1.msra.mxu0 0.0
    %634 = vmatprep.subr.mxu0 0.0
    %635 = vmatpush1.msra.mxu0 0.0
    %636 = vmatprep.mubr.f32.mxu0 0.0
    %637 = vmatmul.mubr.f32.gmra.mrb[0].mxu0 %v566
    %v638 = vpop.f32.mrb[0].mxu0
    %v639 = vadd.f32 0.0, %v638
    %v640 = vpop.f32.mrb[0].mxu0
    %641 = vdwg.mxu0
    %643 = vset.pattern.permute.xlu0 0
    %644 = vperm.xlu0 %643, %v50
    %v645 = vpop.permute.xlu0 %644
    %v647 = vmul.f32 %v645, %v639
    %648 = vset.pattern.permute.xlu0 1
    %649 = vperm.xlu0 %648, %v50
    %v650 = vpop.permute.xlu0 %649
    %v652 = vadd.f32 %v650, %v647
    %v653 = vmul.f32 %v487, %v563
    %v655 = vsel %vm568, %v653, 0
    %657 = vmatprep.subr.mxu0 0.0
    %658 = vmatpush1.msra.mxu0 %v655
    %659 = vmatprep.subr.mxu0 0.0
    %660 = vmatpush1.msra.mxu0 0.0
    %661 = vmatprep.subr.mxu0 0.0
    %662 = vmatpush1.msra.mxu0 0.0
    %663 = vmatprep.subr.mxu0 0.0
    %664 = vmatpush1.msra.mxu0 0.0
    %665 = vmatprep.subr.mxu0 0.0
    %666 = vmatpush1.msra.mxu0 0.0
    %667 = vmatprep.subr.mxu0 0.0
    %668 = vmatpush1.msra.mxu0 0.0
    %669 = vmatprep.subr.mxu0 0.0
    %670 = vmatpush1.msra.mxu0 0.0
    %671 = vmatprep.subr.mxu0 0.0
    %672 = vmatpush1.msra.mxu0 0.0
    %673 = vmatprep.subr.mxu0 0.0
    %674 = vmatpush1.msra.mxu0 0.0
    %675 = vmatprep.subr.mxu0 0.0
    %676 = vmatpush1.msra.mxu0 0.0
    %677 = vmatprep.subr.mxu0 0.0
    %678 = vmatpush1.msra.mxu0 0.0
    %679 = vmatprep.subr.mxu0 0.0
    %680 = vmatpush1.msra.mxu0 0.0
    %681 = vmatprep.subr.mxu0 0.0
    %682 = vmatpush1.msra.mxu0 0.0
    %683 = vmatprep.subr.mxu0 0.0
    %684 = vmatpush1.msra.mxu0 0.0
    %685 = vmatprep.subr.mxu0 0.0
    %686 = vmatpush1.msra.mxu0 0.0
    %687 = vmatprep.subr.mxu0 0.0
    %688 = vmatpush1.msra.mxu0 0.0
    %689 = vmatprep.subr.mxu0 0.0
    %690 = vmatpush1.msra.mxu0 0.0
    %691 = vmatprep.subr.mxu0 0.0
    %692 = vmatpush1.msra.mxu0 0.0
    %693 = vmatprep.subr.mxu0 0.0
    %694 = vmatpush1.msra.mxu0 0.0
    %695 = vmatprep.subr.mxu0 0.0
    %696 = vmatpush1.msra.mxu0 0.0
    %697 = vmatprep.subr.mxu0 0.0
    %698 = vmatpush1.msra.mxu0 0.0
    %699 = vmatprep.subr.mxu0 0.0
    %700 = vmatpush1.msra.mxu0 0.0
    %701 = vmatprep.subr.mxu0 0.0
    %702 = vmatpush1.msra.mxu0 0.0
    %703 = vmatprep.subr.mxu0 0.0
    %704 = vmatpush1.msra.mxu0 0.0
    %705 = vmatprep.subr.mxu0 0.0
    %706 = vmatpush1.msra.mxu0 0.0
    %707 = vmatprep.subr.mxu0 0.0
    %708 = vmatpush1.msra.mxu0 0.0
    %709 = vmatprep.subr.mxu0 0.0
    %710 = vmatpush1.msra.mxu0 0.0
    %711 = vmatprep.subr.mxu0 0.0
    %712 = vmatpush1.msra.mxu0 0.0
    %713 = vmatprep.subr.mxu0 0.0
    %714 = vmatpush1.msra.mxu0 0.0
    %715 = vmatprep.subr.mxu0 0.0
    %716 = vmatpush1.msra.mxu0 0.0
    %717 = vmatprep.subr.mxu0 0.0
    %718 = vmatpush1.msra.mxu0 0.0
    %719 = vmatprep.subr.mxu0 0.0
    %720 = vmatpush1.msra.mxu0 0.0
    %721 = vmatprep.mubr.f32.mxu0 0.0
    %722 = vmatmul.mubr.f32.gmra.mrb[0].mxu0 %v566
    %v723 = vpop.f32.mrb[0].mxu0
    %v724 = vadd.f32 0.0, %v723
    %v725 = vpop.f32.mrb[0].mxu0
    %726 = vdwg.mxu0
    %v727 = vsub.f32 %v652, %v724
    %vm728 = vcmask 15360
    %v730 = vsel %vm728, %v639, 0
    %v733 = vsel %vm92, %v48, 0
    %735 = vmatprep.subr.mxu0 0.0
    %736 = vmatpush1.msra.mxu0 %v733
    %737 = vmatprep.subr.mxu0 0.0
    %738 = vmatpush1.msra.mxu0 0.0
    %739 = vmatprep.subr.mxu0 0.0
    %740 = vmatpush1.msra.mxu0 0.0
    %741 = vmatprep.subr.mxu0 0.0
    %742 = vmatpush1.msra.mxu0 0.0
    %743 = vmatprep.subr.mxu0 0.0
    %744 = vmatpush1.msra.mxu0 0.0
    %745 = vmatprep.subr.mxu0 0.0
    %746 = vmatpush1.msra.mxu0 0.0
    %747 = vmatprep.subr.mxu0 0.0
    %748 = vmatpush1.msra.mxu0 0.0
    %749 = vmatprep.subr.mxu0 0.0
    %750 = vmatpush1.msra.mxu0 0.0
    %751 = vmatprep.subr.mxu0 0.0
    %752 = vmatpush1.msra.mxu0 0.0
    %753 = vmatprep.subr.mxu0 0.0
    %754 = vmatpush1.msra.mxu0 0.0
    %755 = vmatprep.subr.mxu0 0.0
    %756 = vmatpush1.msra.mxu0 0.0
    %757 = vmatprep.subr.mxu0 0.0
    %758 = vmatpush1.msra.mxu0 0.0
    %759 = vmatprep.subr.mxu0 0.0
    %760 = vmatpush1.msra.mxu0 0.0
    %761 = vmatprep.subr.mxu0 0.0
    %762 = vmatpush1.msra.mxu0 0.0
    %763 = vmatprep.subr.mxu0 0.0
    %764 = vmatpush1.msra.mxu0 0.0
    %765 = vmatprep.subr.mxu0 0.0
    %766 = vmatpush1.msra.mxu0 0.0
    %767 = vmatprep.subr.mxu0 0.0
    %768 = vmatpush1.msra.mxu0 0.0
    %769 = vmatprep.subr.mxu0 0.0
    %770 = vmatpush1.msra.mxu0 0.0
    %771 = vmatprep.subr.mxu0 0.0
    %772 = vmatpush1.msra.mxu0 0.0
    %773 = vmatprep.subr.mxu0 0.0
    %774 = vmatpush1.msra.mxu0 0.0
    %775 = vmatprep.subr.mxu0 0.0
    %776 = vmatpush1.msra.mxu0 0.0
    %777 = vmatprep.subr.mxu0 0.0
    %778 = vmatpush1.msra.mxu0 0.0
    %779 = vmatprep.subr.mxu0 0.0
    %780 = vmatpush1.msra.mxu0 0.0
    %781 = vmatprep.subr.mxu0 0.0
    %782 = vmatpush1.msra.mxu0 0.0
    %783 = vmatprep.subr.mxu0 0.0
    %784 = vmatpush1.msra.mxu0 0.0
    %785 = vmatprep.subr.mxu0 0.0
    %786 = vmatpush1.msra.mxu0 0.0
    %787 = vmatprep.subr.mxu0 0.0
    %788 = vmatpush1.msra.mxu0 0.0
    %789 = vmatprep.subr.mxu0 0.0
    %790 = vmatpush1.msra.mxu0 0.0
    %791 = vmatprep.subr.mxu0 0.0
    %792 = vmatpush1.msra.mxu0 0.0
    %793 = vmatprep.subr.mxu0 0.0
    %794 = vmatpush1.msra.mxu0 0.0
    %795 = vmatprep.subr.mxu0 0.0
    %796 = vmatpush1.msra.mxu0 0.0
    %797 = vmatprep.subr.mxu0 0.0
    %798 = vmatpush1.msra.mxu0 0.0
    %799 = vmatprep.mubr.f32.mxu0 0.0
    %800 = vmatmul.mubr.f32.gmra.mrb[0].mxu0 %v730
    %v801 = vpop.f32.mrb[0].mxu0
    %v802 = vadd.f32 0.0, %v801
    %v803 = vpop.f32.mrb[0].mxu0
    %804 = vdwg.mxu0
    %v806 = vsel %vm728, %v727, 0
    %808 = vmatprep.subr.mxu0 0.0
    %809 = vmatpush1.msra.mxu0 %v733
    %810 = vmatprep.subr.mxu0 0.0
    %811 = vmatpush1.msra.mxu0 0.0
    %812 = vmatprep.subr.mxu0 0.0
    %813 = vmatpush1.msra.mxu0 0.0
    %814 = vmatprep.subr.mxu0 0.0
    %815 = vmatpush1.msra.mxu0 0.0
    %816 = vmatprep.subr.mxu0 0.0
    %817 = vmatpush1.msra.mxu0 0.0
    %818 = vmatprep.subr.mxu0 0.0
    %819 = vmatpush1.msra.mxu0 0.0
    %820 = vmatprep.subr.mxu0 0.0
    %821 = vmatpush1.msra.mxu0 0.0
    %822 = vmatprep.subr.mxu0 0.0
    %823 = vmatpush1.msra.mxu0 0.0
    %824 = vmatprep.subr.mxu0 0.0
    %825 = vmatpush1.msra.mxu0 0.0
    %826 = vmatprep.subr.mxu0 0.0
    %827 = vmatpush1.msra.mxu0 0.0
    %828 = vmatprep.subr.mxu0 0.0
    %829 = vmatpush1.msra.mxu0 0.0
    %830 = vmatprep.subr.mxu0 0.0
    %831 = vmatpush1.msra.mxu0 0.0
    %832 = vmatprep.subr.mxu0 0.0
    %833 = vmatpush1.msra.mxu0 0.0
    %834 = vmatprep.subr.mxu0 0.0
    %835 = vmatpush1.msra.mxu0 0.0
    %836 = vmatprep.subr.mxu0 0.0
    %837 = vmatpush1.msra.mxu0 0.0
    %838 = vmatprep.subr.mxu0 0.0
    %839 = vmatpush1.msra.mxu0 0.0
    %840 = vmatprep.subr.mxu0 0.0
    %841 = vmatpush1.msra.mxu0 0.0
    %842 = vmatprep.subr.mxu0 0.0
    %843 = vmatpush1.msra.mxu0 0.0
    %844 = vmatprep.subr.mxu0 0.0
    %845 = vmatpush1.msra.mxu0 0.0
    %846 = vmatprep.subr.mxu0 0.0
    %847 = vmatpush1.msra.mxu0 0.0
    %848 = vmatprep.subr.mxu0 0.0
    %849 = vmatpush1.msra.mxu0 0.0
    %850 = vmatprep.subr.mxu0 0.0
    %851 = vmatpush1.msra.mxu0 0.0
    %852 = vmatprep.subr.mxu0 0.0
    %853 = vmatpush1.msra.mxu0 0.0
    %854 = vmatprep.subr.mxu0 0.0
    %855 = vmatpush1.msra.mxu0 0.0
    %856 = vmatprep.subr.mxu0 0.0
    %857 = vmatpush1.msra.mxu0 0.0
    %858 = vmatprep.subr.mxu0 0.0
    %859 = vmatpush1.msra.mxu0 0.0
    %860 = vmatprep.subr.mxu0 0.0
    %861 = vmatpush1.msra.mxu0 0.0
    %862 = vmatprep.subr.mxu0 0.0
    %863 = vmatpush1.msra.mxu0 0.0
    %864 = vmatprep.subr.mxu0 0.0
    %865 = vmatpush1.msra.mxu0 0.0
    %866 = vmatprep.subr.mxu0 0.0
    %867 = vmatpush1.msra.mxu0 0.0
    %868 = vmatprep.subr.mxu0 0.0
    %869 = vmatpush1.msra.mxu0 0.0
    %870 = vmatprep.subr.mxu0 0.0
    %871 = vmatpush1.msra.mxu0 0.0
    %872 = vmatprep.mubr.f32.mxu0 0.0
    %873 = vmatmul.mubr.f32.gmra.mrb[0].mxu0 %v806
    %v874 = vpop.f32.mrb[0].mxu0
    %v875 = vadd.f32 0.0, %v874
    %v876 = vpop.f32.mrb[0].mxu0
    %877 = vdwg.mxu0
    %v878 = vmul.f32 %v241, %v802
    %v879 = vadd.f32 %v878, %v875
    %v880 = vmin.f32 %v879, 20.0
    %v881 = vmul.f32 %v880, 1.442695
    %v882 = vpow.pop %v881
    %v883 = vadd.f32 %v882, 1.0
    %v884 = vmul.f32 %v883, %v883
    %v885 = vsub.f32 %v884, 1.0
    %v886 = vmul.f32 %v879, %v885
    %v887 = vadd.f32 %v884, 1.0
    %v888 = vrcp.pop %v887
    %v889 = vmul.f32 %v886, %v888
    %vm890 = vcmp.gt.f32.partialorder %v879, 20.0
    %v891 = vsel %vm890, %v879, %v889
    %v892 = vld [vmem:[%s1] sm:$0xff]
    %v894 = vsel %vm728, %v892, 0
    %896 = vmatprep.subr.mxu0 0.0
    %897 = vmatpush1.msra.mxu0 %v733
    %898 = vmatprep.subr.mxu0 0.0
    %899 = vmatpush1.msra.mxu0 0.0
    %900 = vmatprep.subr.mxu0 0.0
    %901 = vmatpush1.msra.mxu0 0.0
    %902 = vmatprep.subr.mxu0 0.0
    %903 = vmatpush1.msra.mxu0 0.0
    %904 = vmatprep.subr.mxu0 0.0
    %905 = vmatpush1.msra.mxu0 0.0
    %906 = vmatprep.subr.mxu0 0.0
    %907 = vmatpush1.msra.mxu0 0.0
    %908 = vmatprep.subr.mxu0 0.0
    %909 = vmatpush1.msra.mxu0 0.0
    %910 = vmatprep.subr.mxu0 0.0
    %911 = vmatpush1.msra.mxu0 0.0
    %912 = vmatprep.subr.mxu0 0.0
    %913 = vmatpush1.msra.mxu0 0.0
    %914 = vmatprep.subr.mxu0 0.0
    %915 = vmatpush1.msra.mxu0 0.0
    %916 = vmatprep.subr.mxu0 0.0
    %917 = vmatpush1.msra.mxu0 0.0
    %918 = vmatprep.subr.mxu0 0.0
    %919 = vmatpush1.msra.mxu0 0.0
    %920 = vmatprep.subr.mxu0 0.0
    %921 = vmatpush1.msra.mxu0 0.0
    %922 = vmatprep.subr.mxu0 0.0
    %923 = vmatpush1.msra.mxu0 0.0
    %924 = vmatprep.subr.mxu0 0.0
    %925 = vmatpush1.msra.mxu0 0.0
    %926 = vmatprep.subr.mxu0 0.0
    %927 = vmatpush1.msra.mxu0 0.0
    %928 = vmatprep.subr.mxu0 0.0
    %929 = vmatpush1.msra.mxu0 0.0
    %930 = vmatprep.subr.mxu0 0.0
    %931 = vmatpush1.msra.mxu0 0.0
    %932 = vmatprep.subr.mxu0 0.0
    %933 = vmatpush1.msra.mxu0 0.0
    %934 = vmatprep.subr.mxu0 0.0
    %935 = vmatpush1.msra.mxu0 0.0
    %936 = vmatprep.subr.mxu0 0.0
    %937 = vmatpush1.msra.mxu0 0.0
    %938 = vmatprep.subr.mxu0 0.0
    %939 = vmatpush1.msra.mxu0 0.0
    %940 = vmatprep.subr.mxu0 0.0
    %941 = vmatpush1.msra.mxu0 0.0
    %942 = vmatprep.subr.mxu0 0.0
    %943 = vmatpush1.msra.mxu0 0.0
    %944 = vmatprep.subr.mxu0 0.0
    %945 = vmatpush1.msra.mxu0 0.0
    %946 = vmatprep.subr.mxu0 0.0
    %947 = vmatpush1.msra.mxu0 0.0
    %948 = vmatprep.subr.mxu0 0.0
    %949 = vmatpush1.msra.mxu0 0.0
    %950 = vmatprep.subr.mxu0 0.0
    %951 = vmatpush1.msra.mxu0 0.0
    %952 = vmatprep.subr.mxu0 0.0
    %953 = vmatpush1.msra.mxu0 0.0
    %954 = vmatprep.subr.mxu0 0.0
    %955 = vmatpush1.msra.mxu0 0.0
    %956 = vmatprep.subr.mxu0 0.0
    %957 = vmatpush1.msra.mxu0 0.0
    %958 = vmatprep.subr.mxu0 0.0
    %959 = vmatpush1.msra.mxu0 0.0
    %960 = vmatprep.mubr.f32.mxu0 0.0
    %961 = vmatmul.mubr.f32.gmra.mrb[0].mxu0 %v894
    %v962 = vpop.f32.mrb[0].mxu0
    %v963 = vadd.f32 0.0, %v962
    %v964 = vpop.f32.mrb[0].mxu0
    %965 = vdwg.mxu0
    %v966 = vld [vmem:[%s2] sm:$0xff]
    %v968 = vsel %vm728, %v966, 0
    %970 = vmatprep.subr.mxu0 0.0
    %971 = vmatpush1.msra.mxu0 %v733
    %972 = vmatprep.subr.mxu0 0.0
    %973 = vmatpush1.msra.mxu0 0.0
    %974 = vmatprep.subr.mxu0 0.0
    %975 = vmatpush1.msra.mxu0 0.0
    %976 = vmatprep.subr.mxu0 0.0
    %977 = vmatpush1.msra.mxu0 0.0
    %978 = vmatprep.subr.mxu0 0.0
    %979 = vmatpush1.msra.mxu0 0.0
    %980 = vmatprep.subr.mxu0 0.0
    %981 = vmatpush1.msra.mxu0 0.0
    %982 = vmatprep.subr.mxu0 0.0
    %983 = vmatpush1.msra.mxu0 0.0
    %984 = vmatprep.subr.mxu0 0.0
    %985 = vmatpush1.msra.mxu0 0.0
    %986 = vmatprep.subr.mxu0 0.0
    %987 = vmatpush1.msra.mxu0 0.0
    %988 = vmatprep.subr.mxu0 0.0
    %989 = vmatpush1.msra.mxu0 0.0
    %990 = vmatprep.subr.mxu0 0.0
    %991 = vmatpush1.msra.mxu0 0.0
    %992 = vmatprep.subr.mxu0 0.0
    %993 = vmatpush1.msra.mxu0 0.0
    %994 = vmatprep.subr.mxu0 0.0
    %995 = vmatpush1.msra.mxu0 0.0
    %996 = vmatprep.subr.mxu0 0.0
    %997 = vmatpush1.msra.mxu0 0.0
    %998 = vmatprep.subr.mxu0 0.0
    %999 = vmatpush1.msra.mxu0 0.0
    %1000 = vmatprep.subr.mxu0 0.0
    %1001 = vmatpush1.msra.mxu0 0.0
    %1002 = vmatprep.subr.mxu0 0.0
    %1003 = vmatpush1.msra.mxu0 0.0
    %1004 = vmatprep.subr.mxu0 0.0
    %1005 = vmatpush1.msra.mxu0 0.0
    %1006 = vmatprep.subr.mxu0 0.0
    %1007 = vmatpush1.msra.mxu0 0.0
    %1008 = vmatprep.subr.mxu0 0.0
    %1009 = vmatpush1.msra.mxu0 0.0
    %1010 = vmatprep.subr.mxu0 0.0
    %1011 = vmatpush1.msra.mxu0 0.0
    %1012 = vmatprep.subr.mxu0 0.0
    %1013 = vmatpush1.msra.mxu0 0.0
    %1014 = vmatprep.subr.mxu0 0.0
    %1015 = vmatpush1.msra.mxu0 0.0
    %1016 = vmatprep.subr.mxu0 0.0
    %1017 = vmatpush1.msra.mxu0 0.0
    %1018 = vmatprep.subr.mxu0 0.0
    %1019 = vmatpush1.msra.mxu0 0.0
    %1020 = vmatprep.subr.mxu0 0.0
    %1021 = vmatpush1.msra.mxu0 0.0
    %1022 = vmatprep.subr.mxu0 0.0
    %1023 = vmatpush1.msra.mxu0 0.0
    %1024 = vmatprep.subr.mxu0 0.0
    %1025 = vmatpush1.msra.mxu0 0.0
    %1026 = vmatprep.subr.mxu0 0.0
    %1027 = vmatpush1.msra.mxu0 0.0
    %1028 = vmatprep.subr.mxu0 0.0
    %1029 = vmatpush1.msra.mxu0 0.0
    %1030 = vmatprep.subr.mxu0 0.0
    %1031 = vmatpush1.msra.mxu0 0.0
    %1032 = vmatprep.subr.mxu0 0.0
    %1033 = vmatpush1.msra.mxu0 0.0
    %1034 = vmatprep.mubr.f32.mxu0 0.0
    %1035 = vmatmul.mubr.f32.gmra.mrb[0].mxu0 %v968
    %v1036 = vpop.f32.mrb[0].mxu0
    %v1037 = vadd.f32 0.0, %v1036
    %v1038 = vpop.f32.mrb[0].mxu0
    %1039 = vdwg.mxu0
    %v1040 = vmul.f32 %v963, %v891
    %v1041 = vadd.f32 %v1040, %v1037
    %1042 = vrot.lane.b32.xlu0 %v1041, 32
    %v1043 = vpop.permute.xlu0 %1042
    %v1044 = vsel %vm65, %v1043, %v1041
    %1045 = vrot.lane.b32.xlu0 %v1044, 32
    %v1046 = vpop.permute.xlu0 %1045
    %v1047 = vsel %vm65, %v1046, %v1041
    %1049 = vrot.lane.b32.xlu0 %v1047, 97
    %v1050 = vpop.permute.xlu0 %1049
    %v1052 = vsel %vm77, %v1050, 0.0
    %v1053 = vld [vmem:[%s4] sm:$0xf]
    %v1054 = vpack.c.bf16 %v1052, %v1052
    %s1055 = scalar_lea.vmem %s4, 4
    %v1056 = vld [vmem:[%s1055] sm:$0xf]
    %v1057 = vpack.c.bf16 %v1041, %v1041
    %v1059 = vsel %vm413, %v1056, 0
    %vm1061 = vcmask 1043456
    %v1063 = vsel %vm1061, %v1057, 0
    %1065 = vmatprep.subr.bf16.mxu0 0
    %1066 = vmatpush1.bf16.msra.mxu0 %v1063
    %1067 = vmatprep.subr.bf16.mxu0 0
    %1068 = vmatpush1.bf16.msra.mxu0 0
    %1069 = vmatprep.subr.bf16.mxu0 0
    %1070 = vmatpush1.bf16.msra.mxu0 0
    %1071 = vmatprep.subr.bf16.mxu0 0
    %1072 = vmatpush1.bf16.msra.mxu0 0
    %1073 = vmatprep.subr.bf16.mxu0 0
    %1074 = vmatpush1.bf16.msra.mxu0 0
    %1075 = vmatprep.subr.bf16.mxu0 0
    %1076 = vmatpush1.bf16.msra.mxu0 0
    %1077 = vmatprep.subr.bf16.mxu0 0
    %1078 = vmatpush1.bf16.msra.mxu0 0
    %1079 = vmatprep.subr.bf16.mxu0 0
    %1080 = vmatpush1.bf16.msra.mxu0 0
    %1081 = vmatprep.subr.bf16.mxu0 0
    %1082 = vmatpush1.bf16.msra.mxu0 0
    %1083 = vmatprep.subr.bf16.mxu0 0
    %1084 = vmatpush1.bf16.msra.mxu0 0
    %1085 = vmatprep.subr.bf16.mxu0 0
    %1086 = vmatpush1.bf16.msra.mxu0 0
    %1087 = vmatprep.subr.bf16.mxu0 0
    %1088 = vmatpush1.bf16.msra.mxu0 0
    %1089 = vmatprep.subr.bf16.mxu0 0
    %1090 = vmatpush1.bf16.msra.mxu0 0
    %1091 = vmatprep.subr.bf16.mxu0 0
    %1092 = vmatpush1.bf16.msra.mxu0 0
    %1093 = vmatprep.subr.bf16.mxu0 0
    %1094 = vmatpush1.bf16.msra.mxu0 0
    %1095 = vmatprep.subr.bf16.mxu0 0
    %1096 = vmatpush1.bf16.msra.mxu0 0
    %1097 = vmatprep.mubr.bf16.mxu0 0
    %1098 = vmatmul.mubr.bf16.gmra.mrb[0].mxu0 %v1059
    %v1099 = vpop.f32.mrb[0].mxu0
    %v1100 = vadd.f32 0.0, %v1099
    %v1101 = vpop.f32.mrb[0].mxu0
    %v1102 = vpop.f32.mrb[0].mxu0
    %v1103 = vpop.f32.mrb[0].mxu0
    %1104 = vdwg.mxu0
    %v1106 = vsel %vm413, %v1053, 0
    %v1109 = vsel %vm1061, %v1054, 0
    %1111 = vmatprep.subr.bf16.mxu0 0
    %1112 = vmatpush1.bf16.msra.mxu0 %v1109
    %1113 = vmatprep.subr.bf16.mxu0 0
    %1114 = vmatpush1.bf16.msra.mxu0 0
    %1115 = vmatprep.subr.bf16.mxu0 0
    %1116 = vmatpush1.bf16.msra.mxu0 0
    %1117 = vmatprep.subr.bf16.mxu0 0
    %1118 = vmatpush1.bf16.msra.mxu0 0
    %1119 = vmatprep.subr.bf16.mxu0 0
    %1120 = vmatpush1.bf16.msra.mxu0 0
    %1121 = vmatprep.subr.bf16.mxu0 0
    %1122 = vmatpush1.bf16.msra.mxu0 0
    %1123 = vmatprep.subr.bf16.mxu0 0
    %1124 = vmatpush1.bf16.msra.mxu0 0
    %1125 = vmatprep.subr.bf16.mxu0 0
    %1126 = vmatpush1.bf16.msra.mxu0 0
    %1127 = vmatprep.subr.bf16.mxu0 0
    %1128 = vmatpush1.bf16.msra.mxu0 0
    %1129 = vmatprep.subr.bf16.mxu0 0
    %1130 = vmatpush1.bf16.msra.mxu0 0
    %1131 = vmatprep.subr.bf16.mxu0 0
    %1132 = vmatpush1.bf16.msra.mxu0 0
    %1133 = vmatprep.subr.bf16.mxu0 0
    %1134 = vmatpush1.bf16.msra.mxu0 0
    %1135 = vmatprep.subr.bf16.mxu0 0
    %1136 = vmatpush1.bf16.msra.mxu0 0
    %1137 = vmatprep.subr.bf16.mxu0 0
    %1138 = vmatpush1.bf16.msra.mxu0 0
    %1139 = vmatprep.subr.bf16.mxu0 0
    %1140 = vmatpush1.bf16.msra.mxu0 0
    %1141 = vmatprep.subr.bf16.mxu0 0
    %1142 = vmatpush1.bf16.msra.mxu0 0
    %1143 = vmatprep.mubr.bf16.mxu0 0
    %1144 = vmatmul.mubr.bf16.gmra.mrb[0].mxu0 %v1106
    %v1145 = vpop.f32.mrb[0].mxu0
    %v1146 = vadd.f32 %v1100, %v1145
    %v1147 = vpop.f32.mrb[0].mxu0
    %v1148 = vpop.f32.mrb[0].mxu0
    %v1149 = vpop.f32.mrb[0].mxu0
    %1150 = vdwg.mxu0
    %1151 = vrot.lane.b32.xlu0 %v1047, 127
    %v1152 = vpop.permute.xlu0 %1151
    %v1154 = vsel %vm187, %v1152, 0.0
    %s1155 = scalar_lea.vmem %s4, 8
    %v1156 = vld [vmem:[%s1155] sm:$0xf]
    %v1157 = vpack.c.bf16 %v1154, %v1154
    %v1159 = vsel %vm413, %v1156, 0
    %v1162 = vsel %vm1061, %v1157, 0
    %1164 = vmatprep.subr.bf16.mxu0 0
    %1165 = vmatpush1.bf16.msra.mxu0 %v1162
    %1166 = vmatprep.subr.bf16.mxu0 0
    %1167 = vmatpush1.bf16.msra.mxu0 0
    %1168 = vmatprep.subr.bf16.mxu0 0
    %1169 = vmatpush1.bf16.msra.mxu0 0
    %1170 = vmatprep.subr.bf16.mxu0 0
    %1171 = vmatpush1.bf16.msra.mxu0 0
    %1172 = vmatprep.subr.bf16.mxu0 0
    %1173 = vmatpush1.bf16.msra.mxu0 0
    %1174 = vmatprep.subr.bf16.mxu0 0
    %1175 = vmatpush1.bf16.msra.mxu0 0
    %1176 = vmatprep.subr.bf16.mxu0 0
    %1177 = vmatpush1.bf16.msra.mxu0 0
    %1178 = vmatprep.subr.bf16.mxu0 0
    %1179 = vmatpush1.bf16.msra.mxu0 0
    %1180 = vmatprep.subr.bf16.mxu0 0
    %1181 = vmatpush1.bf16.msra.mxu0 0
    %1182 = vmatprep.subr.bf16.mxu0 0
    %1183 = vmatpush1.bf16.msra.mxu0 0
    %1184 = vmatprep.subr.bf16.mxu0 0
    %1185 = vmatpush1.bf16.msra.mxu0 0
    %1186 = vmatprep.subr.bf16.mxu0 0
    %1187 = vmatpush1.bf16.msra.mxu0 0
    %1188 = vmatprep.subr.bf16.mxu0 0
    %1189 = vmatpush1.bf16.msra.mxu0 0
    %1190 = vmatprep.subr.bf16.mxu0 0
    %1191 = vmatpush1.bf16.msra.mxu0 0
    %1192 = vmatprep.subr.bf16.mxu0 0
    %1193 = vmatpush1.bf16.msra.mxu0 0
    %1194 = vmatprep.subr.bf16.mxu0 0
    %1195 = vmatpush1.bf16.msra.mxu0 0
    %1196 = vmatprep.mubr.bf16.mxu0 0
    %1197 = vmatmul.mubr.bf16.gmra.mrb[0].mxu0 %v1159
    %v1198 = vpop.f32.mrb[0].mxu0
    %v1199 = vadd.f32 0.0, %v1198
    %v1200 = vpop.f32.mrb[0].mxu0
    %v1201 = vpop.f32.mrb[0].mxu0
    %v1202 = vpop.f32.mrb[0].mxu0
    %1203 = vdwg.mxu0
    %v1204 = vadd.f32 %v1146, %v1199
    %v1205 = vld [vmem:[%s8] sm:$0xff]
    %v1207 = vsel %vm243, %v1204, 0
    %1209 = vmatprep.subr.mxu0 0.0
    %1210 = vmatpush1.msra.mxu0 %v44
    %1211 = vmatprep.subr.mxu0 0.0
    %1212 = vmatpush1.msra.mxu0 %v45
    %1213 = vmatprep.subr.mxu0 0.0
    %1214 = vmatpush1.msra.mxu0 %v46
    %1215 = vmatprep.subr.mxu0 0.0
    %1216 = vmatpush1.msra.mxu0 %v47
    %1217 = vmatprep.subr.mxu0 0.0
    %1218 = vmatpush1.msra.mxu0 0.0
    %1219 = vmatprep.subr.mxu0 0.0
    %1220 = vmatpush1.msra.mxu0 0.0
    %1221 = vmatprep.subr.mxu0 0.0
    %1222 = vmatpush1.msra.mxu0 0.0
    %1223 = vmatprep.subr.mxu0 0.0
    %1224 = vmatpush1.msra.mxu0 0.0
    %1225 = vmatprep.subr.mxu0 0.0
    %1226 = vmatpush1.msra.mxu0 0.0
    %1227 = vmatprep.subr.mxu0 0.0
    %1228 = vmatpush1.msra.mxu0 0.0
    %1229 = vmatprep.subr.mxu0 0.0
    %1230 = vmatpush1.msra.mxu0 0.0
    %1231 = vmatprep.subr.mxu0 0.0
    %1232 = vmatpush1.msra.mxu0 0.0
    %1233 = vmatprep.subr.mxu0 0.0
    %1234 = vmatpush1.msra.mxu0 0.0
    %1235 = vmatprep.subr.mxu0 0.0
    %1236 = vmatpush1.msra.mxu0 0.0
    %1237 = vmatprep.subr.mxu0 0.0
    %1238 = vmatpush1.msra.mxu0 0.0
    %1239 = vmatprep.subr.mxu0 0.0
    %1240 = vmatpush1.msra.mxu0 0.0
    %1241 = vmatprep.subr.mxu0 0.0
    %1242 = vmatpush1.msra.mxu0 0.0
    %1243 = vmatprep.subr.mxu0 0.0
    %1244 = vmatpush1.msra.mxu0 0.0
    %1245 = vmatprep.subr.mxu0 0.0
    %1246 = vmatpush1.msra.mxu0 0.0
    %1247 = vmatprep.subr.mxu0 0.0
    %1248 = vmatpush1.msra.mxu0 0.0
    %1249 = vmatprep.subr.mxu0 0.0
    %1250 = vmatpush1.msra.mxu0 0.0
    %1251 = vmatprep.subr.mxu0 0.0
    %1252 = vmatpush1.msra.mxu0 0.0
    %1253 = vmatprep.subr.mxu0 0.0
    %1254 = vmatpush1.msra.mxu0 0.0
    %1255 = vmatprep.subr.mxu0 0.0
    %1256 = vmatpush1.msra.mxu0 0.0
    %1257 = vmatprep.subr.mxu0 0.0
    %1258 = vmatpush1.msra.mxu0 0.0
    %1259 = vmatprep.subr.mxu0 0.0
    %1260 = vmatpush1.msra.mxu0 0.0
    %1261 = vmatprep.subr.mxu0 0.0
    %1262 = vmatpush1.msra.mxu0 0.0
    %1263 = vmatprep.subr.mxu0 0.0
    %1264 = vmatpush1.msra.mxu0 0.0
    %1265 = vmatprep.subr.mxu0 0.0
    %1266 = vmatpush1.msra.mxu0 0.0
    %1267 = vmatprep.subr.mxu0 0.0
    %1268 = vmatpush1.msra.mxu0 0.0
    %1269 = vmatprep.subr.mxu0 0.0
    %1270 = vmatpush1.msra.mxu0 0.0
    %1271 = vmatprep.subr.mxu0 0.0
    %1272 = vmatpush1.msra.mxu0 0.0
    %1273 = vmatprep.mubr.f32.mxu0 0.0
    %1274 = vmatmul.mubr.f32.gmra.mrb[0].mxu0 %v1207
    %v1275 = vpop.f32.mrb[0].mxu0
    %v1276 = vadd.f32 0.0, %v1275
    %v1277 = vpop.f32.mrb[0].mxu0
    %1278 = vdwg.mxu0
    %v1279 = vmul.f32 %v1204, %v1204
    %1280 = vset.pattern.permute.xlu0 2
    %1281 = vperm.xlu0 %1280, %v318
    %v1282 = vpop.permute.xlu0 %1281
    %v1284 = vadd.f32 %v1276, %v1282
    %1285 = vset.pattern.permute.xlu0 2
    %1286 = vperm.xlu0 %1285, %v325
    %v1287 = vpop.permute.xlu0 %1286
    %v1289 = vmul.f32 %v1287, %v1276
    %v1291 = vsel %vm243, %v1279, 0
    %1293 = vmatprep.subr.mxu0 0.0
    %1294 = vmatpush1.msra.mxu0 %v44
    %1295 = vmatprep.subr.mxu0 0.0
    %1296 = vmatpush1.msra.mxu0 %v45
    %1297 = vmatprep.subr.mxu0 0.0
    %1298 = vmatpush1.msra.mxu0 %v46
    %1299 = vmatprep.subr.mxu0 0.0
    %1300 = vmatpush1.msra.mxu0 %v47
    %1301 = vmatprep.subr.mxu0 0.0
    %1302 = vmatpush1.msra.mxu0 0.0
    %1303 = vmatprep.subr.mxu0 0.0
    %1304 = vmatpush1.msra.mxu0 0.0
    %1305 = vmatprep.subr.mxu0 0.0
    %1306 = vmatpush1.msra.mxu0 0.0
    %1307 = vmatprep.subr.mxu0 0.0
    %1308 = vmatpush1.msra.mxu0 0.0
    %1309 = vmatprep.subr.mxu0 0.0
    %1310 = vmatpush1.msra.mxu0 0.0
    %1311 = vmatprep.subr.mxu0 0.0
    %1312 = vmatpush1.msra.mxu0 0.0
    %1313 = vmatprep.subr.mxu0 0.0
    %1314 = vmatpush1.msra.mxu0 0.0
    %1315 = vmatprep.subr.mxu0 0.0
    %1316 = vmatpush1.msra.mxu0 0.0
    %1317 = vmatprep.subr.mxu0 0.0
    %1318 = vmatpush1.msra.mxu0 0.0
    %1319 = vmatprep.subr.mxu0 0.0
    %1320 = vmatpush1.msra.mxu0 0.0
    %1321 = vmatprep.subr.mxu0 0.0
    %1322 = vmatpush1.msra.mxu0 0.0
    %1323 = vmatprep.subr.mxu0 0.0
    %1324 = vmatpush1.msra.mxu0 0.0
    %1325 = vmatprep.subr.mxu0 0.0
    %1326 = vmatpush1.msra.mxu0 0.0
    %1327 = vmatprep.subr.mxu0 0.0
    %1328 = vmatpush1.msra.mxu0 0.0
    %1329 = vmatprep.subr.mxu0 0.0
    %1330 = vmatpush1.msra.mxu0 0.0
    %1331 = vmatprep.subr.mxu0 0.0
    %1332 = vmatpush1.msra.mxu0 0.0
    %1333 = vmatprep.subr.mxu0 0.0
    %1334 = vmatpush1.msra.mxu0 0.0
    %1335 = vmatprep.subr.mxu0 0.0
    %1336 = vmatpush1.msra.mxu0 0.0
    %1337 = vmatprep.subr.mxu0 0.0
    %1338 = vmatpush1.msra.mxu0 0.0
    %1339 = vmatprep.subr.mxu0 0.0
    %1340 = vmatpush1.msra.mxu0 0.0
    %1341 = vmatprep.subr.mxu0 0.0
    %1342 = vmatpush1.msra.mxu0 0.0
    %1343 = vmatprep.subr.mxu0 0.0
    %1344 = vmatpush1.msra.mxu0 0.0
    %1345 = vmatprep.subr.mxu0 0.0
    %1346 = vmatpush1.msra.mxu0 0.0
    %1347 = vmatprep.subr.mxu0 0.0
    %1348 = vmatpush1.msra.mxu0 0.0
    %1349 = vmatprep.subr.mxu0 0.0
    %1350 = vmatpush1.msra.mxu0 0.0
    %1351 = vmatprep.subr.mxu0 0.0
    %1352 = vmatpush1.msra.mxu0 0.0
    %1353 = vmatprep.subr.mxu0 0.0
    %1354 = vmatpush1.msra.mxu0 0.0
    %1355 = vmatprep.subr.mxu0 0.0
    %1356 = vmatpush1.msra.mxu0 0.0
    %1357 = vmatprep.mubr.f32.mxu0 0.0
    %1358 = vmatmul.mubr.f32.gmra.mrb[0].mxu0 %v1291
    %v1359 = vpop.f32.mrb[0].mxu0
    %v1360 = vadd.f32 %v1289, %v1359
    %v1361 = vpop.f32.mrb[0].mxu0
    %1362 = vdwg.mxu0
    %1363 = vset.pattern.permute.xlu0 2
    %1364 = vperm.xlu0 %1363, %v406
    %v1365 = vpop.permute.xlu0 %1364
    %v1367 = vadd.f32 %v1360, %v1365
    %1368 = vmatprep.subr.mxu0 0.0
    %1369 = vmatpush1.msra.mxu0 %v1284
    %1370 = vmatprep.subr.mxu0 0.0
    %1371 = vmatpush1.msra.mxu0 0.0
    %1372 = vmatprep.subr.mxu0 0.0
    %1373 = vmatpush1.msra.mxu0 0.0
    %1374 = vmatprep.subr.mxu0 0.0
    %1375 = vmatpush1.msra.mxu0 0.0
    %1376 = vmatprep.subr.mxu0 0.0
    %1377 = vmatpush1.msra.mxu0 0.0
    %1378 = vmatprep.subr.mxu0 0.0
    %1379 = vmatpush1.msra.mxu0 0.0
    %1380 = vmatprep.subr.mxu0 0.0
    %1381 = vmatpush1.msra.mxu0 0.0
    %1382 = vmatprep.subr.mxu0 0.0
    %1383 = vmatpush1.msra.mxu0 0.0
    %1384 = vmatprep.subr.mxu0 0.0
    %1385 = vmatpush1.msra.mxu0 0.0
    %1386 = vmatprep.subr.mxu0 0.0
    %1387 = vmatpush1.msra.mxu0 0.0
    %1388 = vmatprep.subr.mxu0 0.0
    %1389 = vmatpush1.msra.mxu0 0.0
    %1390 = vmatprep.subr.mxu0 0.0
    %1391 = vmatpush1.msra.mxu0 0.0
    %1392 = vmatprep.subr.mxu0 0.0
    %1393 = vmatpush1.msra.mxu0 0.0
    %1394 = vmatprep.subr.mxu0 0.0
    %1395 = vmatpush1.msra.mxu0 0.0
    %1396 = vmatprep.subr.mxu0 0.0
    %1397 = vmatpush1.msra.mxu0 0.0
    %1398 = vmatprep.subr.mxu0 0.0
    %1399 = vmatpush1.msra.mxu0 0.0
    %1400 = vmatprep.subr.mxu0 0.0
    %1401 = vmatpush1.msra.mxu0 0.0
    %1402 = vmatprep.subr.mxu0 0.0
    %1403 = vmatpush1.msra.mxu0 0.0
    %1404 = vmatprep.subr.mxu0 0.0
    %1405 = vmatpush1.msra.mxu0 0.0
    %1406 = vmatprep.subr.mxu0 0.0
    %1407 = vmatpush1.msra.mxu0 0.0
    %1408 = vmatprep.subr.mxu0 0.0
    %1409 = vmatpush1.msra.mxu0 0.0
    %1410 = vmatprep.subr.mxu0 0.0
    %1411 = vmatpush1.msra.mxu0 0.0
    %1412 = vmatprep.subr.mxu0 0.0
    %1413 = vmatpush1.msra.mxu0 0.0
    %1414 = vmatprep.subr.mxu0 0.0
    %1415 = vmatpush1.msra.mxu0 0.0
    %1416 = vmatprep.subr.mxu0 0.0
    %1417 = vmatpush1.msra.mxu0 0.0
    %1418 = vmatprep.subr.mxu0 0.0
    %1419 = vmatpush1.msra.mxu0 0.0
    %1420 = vmatprep.subr.mxu0 0.0
    %1421 = vmatpush1.msra.mxu0 0.0
    %1422 = vmatprep.subr.mxu0 0.0
    %1423 = vmatpush1.msra.mxu0 0.0
    %1424 = vmatprep.subr.mxu0 0.0
    %1425 = vmatpush1.msra.mxu0 0.0
    %1426 = vmatprep.subr.mxu0 0.0
    %1427 = vmatpush1.msra.mxu0 0.0
    %1428 = vmatprep.subr.mxu0 0.0
    %1429 = vmatpush1.msra.mxu0 0.0
    %1430 = vmatprep.subr.mxu0 0.0
    %1431 = vmatpush1.msra.mxu0 0.0
    %1432 = vmatprep.mubr.f32.mxu0 0.0
    %1433 = vmatmul.mubr.f32.gmra.mrb[0].mxu0 %v415
    %v1434 = vpop.f32.mrb[0].mxu0
    %v1435 = vadd.f32 0.0, %v1434
    %v1436 = vpop.f32.mrb[0].mxu0
    %1437 = vdwg.mxu0
    %v1438 = vmul.f32 %v1435, 0.0078125
    %1439 = vmatprep.subr.mxu0 0.0
    %1440 = vmatpush1.msra.mxu0 %v1367
    %1441 = vmatprep.subr.mxu0 0.0
    %1442 = vmatpush1.msra.mxu0 0.0
    %1443 = vmatprep.subr.mxu0 0.0
    %1444 = vmatpush1.msra.mxu0 0.0
    %1445 = vmatprep.subr.mxu0 0.0
    %1446 = vmatpush1.msra.mxu0 0.0
    %1447 = vmatprep.subr.mxu0 0.0
    %1448 = vmatpush1.msra.mxu0 0.0
    %1449 = vmatprep.subr.mxu0 0.0
    %1450 = vmatpush1.msra.mxu0 0.0
    %1451 = vmatprep.subr.mxu0 0.0
    %1452 = vmatpush1.msra.mxu0 0.0
    %1453 = vmatprep.subr.mxu0 0.0
    %1454 = vmatpush1.msra.mxu0 0.0
    %1455 = vmatprep.subr.mxu0 0.0
    %1456 = vmatpush1.msra.mxu0 0.0
    %1457 = vmatprep.subr.mxu0 0.0
    %1458 = vmatpush1.msra.mxu0 0.0
    %1459 = vmatprep.subr.mxu0 0.0
    %1460 = vmatpush1.msra.mxu0 0.0
    %1461 = vmatprep.subr.mxu0 0.0
    %1462 = vmatpush1.msra.mxu0 0.0
    %1463 = vmatprep.subr.mxu0 0.0
    %1464 = vmatpush1.msra.mxu0 0.0
    %1465 = vmatprep.subr.mxu0 0.0
    %1466 = vmatpush1.msra.mxu0 0.0
    %1467 = vmatprep.subr.mxu0 0.0
    %1468 = vmatpush1.msra.mxu0 0.0
    %1469 = vmatprep.subr.mxu0 0.0
    %1470 = vmatpush1.msra.mxu0 0.0
    %1471 = vmatprep.subr.mxu0 0.0
    %1472 = vmatpush1.msra.mxu0 0.0
    %1473 = vmatprep.subr.mxu0 0.0
    %1474 = vmatpush1.msra.mxu0 0.0
    %1475 = vmatprep.subr.mxu0 0.0
    %1476 = vmatpush1.msra.mxu0 0.0
    %1477 = vmatprep.subr.mxu0 0.0
    %1478 = vmatpush1.msra.mxu0 0.0
    %1479 = vmatprep.subr.mxu0 0.0
    %1480 = vmatpush1.msra.mxu0 0.0
    %1481 = vmatprep.subr.mxu0 0.0
    %1482 = vmatpush1.msra.mxu0 0.0
    %1483 = vmatprep.subr.mxu0 0.0
    %1484 = vmatpush1.msra.mxu0 0.0
    %1485 = vmatprep.subr.mxu0 0.0
    %1486 = vmatpush1.msra.mxu0 0.0
    %1487 = vmatprep.subr.mxu0 0.0
    %1488 = vmatpush1.msra.mxu0 0.0
    %1489 = vmatprep.subr.mxu0 0.0
    %1490 = vmatpush1.msra.mxu0 0.0
    %1491 = vmatprep.subr.mxu0 0.0
    %1492 = vmatpush1.msra.mxu0 0.0
    %1493 = vmatprep.subr.mxu0 0.0
    %1494 = vmatpush1.msra.mxu0 0.0
    %1495 = vmatprep.subr.mxu0 0.0
    %1496 = vmatpush1.msra.mxu0 0.0
    %1497 = vmatprep.subr.mxu0 0.0
    %1498 = vmatpush1.msra.mxu0 0.0
    %1499 = vmatprep.subr.mxu0 0.0
    %1500 = vmatpush1.msra.mxu0 0.0
    %1501 = vmatprep.subr.mxu0 0.0
    %1502 = vmatpush1.msra.mxu0 0.0
    %1503 = vmatprep.mubr.f32.mxu0 0.0
    %1504 = vmatmul.mubr.f32.gmra.mrb[0].mxu0 %v415
    %v1505 = vpop.f32.mrb[0].mxu0
    %v1506 = vadd.f32 0.0, %v1505
    %v1507 = vpop.f32.mrb[0].mxu0
    %1508 = vdwg.mxu0
    %v1509 = vmul.f32 %v1506, 0.0078125
    %v1510 = vmul.f32 %v1438, %v1438
    %v1511 = vsub.f32 %v1509, %v1510
    %v1512 = vmax.f32 %v1511, 0.0
    %v1513 = vadd.f32 %v1512, 1e-05
    %v1514 = vrsqrt.pop %v1513
    %v1516 = vsel %vm564, %v1205, 0
    %v1519 = vsel %vm568, %v1514, 0
    %1521 = vmatprep.subr.mxu0 0.0
    %1522 = vmatpush1.msra.mxu0 %v1519
    %1523 = vmatprep.subr.mxu0 0.0
    %1524 = vmatpush1.msra.mxu0 0.0
    %1525 = vmatprep.subr.mxu0 0.0
    %1526 = vmatpush1.msra.mxu0 0.0
    %1527 = vmatprep.subr.mxu0 0.0
    %1528 = vmatpush1.msra.mxu0 0.0
    %1529 = vmatprep.subr.mxu0 0.0
    %1530 = vmatpush1.msra.mxu0 0.0
    %1531 = vmatprep.subr.mxu0 0.0
    %1532 = vmatpush1.msra.mxu0 0.0
    %1533 = vmatprep.subr.mxu0 0.0
    %1534 = vmatpush1.msra.mxu0 0.0
    %1535 = vmatprep.subr.mxu0 0.0
    %1536 = vmatpush1.msra.mxu0 0.0
    %1537 = vmatprep.subr.mxu0 0.0
    %1538 = vmatpush1.msra.mxu0 0.0
    %1539 = vmatprep.subr.mxu0 0.0
    %1540 = vmatpush1.msra.mxu0 0.0
    %1541 = vmatprep.subr.mxu0 0.0
    %1542 = vmatpush1.msra.mxu0 0.0
    %1543 = vmatprep.subr.mxu0 0.0
    %1544 = vmatpush1.msra.mxu0 0.0
    %1545 = vmatprep.subr.mxu0 0.0
    %1546 = vmatpush1.msra.mxu0 0.0
    %1547 = vmatprep.subr.mxu0 0.0
    %1548 = vmatpush1.msra.mxu0 0.0
    %1549 = vmatprep.subr.mxu0 0.0
    %1550 = vmatpush1.msra.mxu0 0.0
    %1551 = vmatprep.subr.mxu0 0.0
    %1552 = vmatpush1.msra.mxu0 0.0
    %1553 = vmatprep.subr.mxu0 0.0
    %1554 = vmatpush1.msra.mxu0 0.0
    %1555 = vmatprep.subr.mxu0 0.0
    %1556 = vmatpush1.msra.mxu0 0.0
    %1557 = vmatprep.subr.mxu0 0.0
    %1558 = vmatpush1.msra.mxu0 0.0
    %1559 = vmatprep.subr.mxu0 0.0
    %1560 = vmatpush1.msra.mxu0 0.0
    %1561 = vmatprep.subr.mxu0 0.0
    %1562 = vmatpush1.msra.mxu0 0.0
    %1563 = vmatprep.subr.mxu0 0.0
    %1564 = vmatpush1.msra.mxu0 0.0
    %1565 = vmatprep.subr.mxu0 0.0
    %1566 = vmatpush1.msra.mxu0 0.0
    %1567 = vmatprep.subr.mxu0 0.0
    %1568 = vmatpush1.msra.mxu0 0.0
    %1569 = vmatprep.subr.mxu0 0.0
    %1570 = vmatpush1.msra.mxu0 0.0
    %1571 = vmatprep.subr.mxu0 0.0
    %1572 = vmatpush1.msra.mxu0 0.0
    %1573 = vmatprep.subr.mxu0 0.0
    %1574 = vmatpush1.msra.mxu0 0.0
    %1575 = vmatprep.subr.mxu0 0.0
    %1576 = vmatpush1.msra.mxu0 0.0
    %1577 = vmatprep.subr.mxu0 0.0
    %1578 = vmatpush1.msra.mxu0 0.0
    %1579 = vmatprep.subr.mxu0 0.0
    %1580 = vmatpush1.msra.mxu0 0.0
    %1581 = vmatprep.subr.mxu0 0.0
    %1582 = vmatpush1.msra.mxu0 0.0
    %1583 = vmatprep.subr.mxu0 0.0
    %1584 = vmatpush1.msra.mxu0 0.0
    %1585 = vmatprep.mubr.f32.mxu0 0.0
    %1586 = vmatmul.mubr.f32.gmra.mrb[0].mxu0 %v1516
    %v1587 = vpop.f32.mrb[0].mxu0
    %v1588 = vadd.f32 0.0, %v1587
    %v1589 = vpop.f32.mrb[0].mxu0
    %1590 = vdwg.mxu0
    %1591 = vset.pattern.permute.xlu0 2
    %1592 = vperm.xlu0 %1591, %v50
    %v1593 = vpop.permute.xlu0 %1592
    %v1595 = vmul.f32 %v1593, %v1588
    %1596 = vset.pattern.permute.xlu0 3
    %1597 = vperm.xlu0 %1596, %v50
    %v1598 = vpop.permute.xlu0 %1597
    %v1600 = vadd.f32 %v1598, %v1595
    %v1601 = vmul.f32 %v1438, %v1514
    %v1603 = vsel %vm568, %v1601, 0
    %1605 = vmatprep.subr.mxu0 0.0
    %1606 = vmatpush1.msra.mxu0 %v1603
    %1607 = vmatprep.subr.mxu0 0.0
    %1608 = vmatpush1.msra.mxu0 0.0
    %1609 = vmatprep.subr.mxu0 0.0
    %1610 = vmatpush1.msra.mxu0 0.0
    %1611 = vmatprep.subr.mxu0 0.0
    %1612 = vmatpush1.msra.mxu0 0.0
    %1613 = vmatprep.subr.mxu0 0.0
    %1614 = vmatpush1.msra.mxu0 0.0
    %1615 = vmatprep.subr.mxu0 0.0
    %1616 = vmatpush1.msra.mxu0 0.0
    %1617 = vmatprep.subr.mxu0 0.0
    %1618 = vmatpush1.msra.mxu0 0.0
    %1619 = vmatprep.subr.mxu0 0.0
    %1620 = vmatpush1.msra.mxu0 0.0
    %1621 = vmatprep.subr.mxu0 0.0
    %1622 = vmatpush1.msra.mxu0 0.0
    %1623 = vmatprep.subr.mxu0 0.0
    %1624 = vmatpush1.msra.mxu0 0.0
    %1625 = vmatprep.subr.mxu0 0.0
    %1626 = vmatpush1.msra.mxu0 0.0
    %1627 = vmatprep.subr.mxu0 0.0
    %1628 = vmatpush1.msra.mxu0 0.0
    %1629 = vmatprep.subr.mxu0 0.0
    %1630 = vmatpush1.msra.mxu0 0.0
    %1631 = vmatprep.subr.mxu0 0.0
    %1632 = vmatpush1.msra.mxu0 0.0
    %1633 = vmatprep.subr.mxu0 0.0
    %1634 = vmatpush1.msra.mxu0 0.0
    %1635 = vmatprep.subr.mxu0 0.0
    %1636 = vmatpush1.msra.mxu0 0.0
    %1637 = vmatprep.subr.mxu0 0.0
    %1638 = vmatpush1.msra.mxu0 0.0
    %1639 = vmatprep.subr.mxu0 0.0
    %1640 = vmatpush1.msra.mxu0 0.0
    %1641 = vmatprep.subr.mxu0 0.0
    %1642 = vmatpush1.msra.mxu0 0.0
    %1643 = vmatprep.subr.mxu0 0.0
    %1644 = vmatpush1.msra.mxu0 0.0
    %1645 = vmatprep.subr.mxu0 0.0
    %1646 = vmatpush1.msra.mxu0 0.0
    %1647 = vmatprep.subr.mxu0 0.0
    %1648 = vmatpush1.msra.mxu0 0.0
    %1649 = vmatprep.subr.mxu0 0.0
    %1650 = vmatpush1.msra.mxu0 0.0
    %1651 = vmatprep.subr.mxu0 0.0
    %1652 = vmatpush1.msra.mxu0 0.0
    %1653 = vmatprep.subr.mxu0 0.0
    %1654 = vmatpush1.msra.mxu0 0.0
    %1655 = vmatprep.subr.mxu0 0.0
    %1656 = vmatpush1.msra.mxu0 0.0
    %1657 = vmatprep.subr.mxu0 0.0
    %1658 = vmatpush1.msra.mxu0 0.0
    %1659 = vmatprep.subr.mxu0 0.0
    %1660 = vmatpush1.msra.mxu0 0.0
    %1661 = vmatprep.subr.mxu0 0.0
    %1662 = vmatpush1.msra.mxu0 0.0
    %1663 = vmatprep.subr.mxu0 0.0
    %1664 = vmatpush1.msra.mxu0 0.0
    %1665 = vmatprep.subr.mxu0 0.0
    %1666 = vmatpush1.msra.mxu0 0.0
    %1667 = vmatprep.subr.mxu0 0.0
    %1668 = vmatpush1.msra.mxu0 0.0
    %1669 = vmatprep.mubr.f32.mxu0 0.0
    %1670 = vmatmul.mubr.f32.gmra.mrb[0].mxu0 %v1516
    %v1671 = vpop.f32.mrb[0].mxu0
    %v1672 = vadd.f32 0.0, %v1671
    %v1673 = vpop.f32.mrb[0].mxu0
    %1674 = vdwg.mxu0
    %v1675 = vsub.f32 %v1600, %v1672
    %v1677 = vsel %vm728, %v1588, 0
    %1679 = vmatprep.subr.mxu0 0.0
    %1680 = vmatpush1.msra.mxu0 %v733
    %1681 = vmatprep.subr.mxu0 0.0
    %1682 = vmatpush1.msra.mxu0 0.0
    %1683 = vmatprep.subr.mxu0 0.0
    %1684 = vmatpush1.msra.mxu0 0.0
    %1685 = vmatprep.subr.mxu0 0.0
    %1686 = vmatpush1.msra.mxu0 0.0
    %1687 = vmatprep.subr.mxu0 0.0
    %1688 = vmatpush1.msra.mxu0 0.0
    %1689 = vmatprep.subr.mxu0 0.0
    %1690 = vmatpush1.msra.mxu0 0.0
    %1691 = vmatprep.subr.mxu0 0.0
    %1692 = vmatpush1.msra.mxu0 0.0
    %1693 = vmatprep.subr.mxu0 0.0
    %1694 = vmatpush1.msra.mxu0 0.0
    %1695 = vmatprep.subr.mxu0 0.0
    %1696 = vmatpush1.msra.mxu0 0.0
    %1697 = vmatprep.subr.mxu0 0.0
    %1698 = vmatpush1.msra.mxu0 0.0
    %1699 = vmatprep.subr.mxu0 0.0
    %1700 = vmatpush1.msra.mxu0 0.0
    %1701 = vmatprep.subr.mxu0 0.0
    %1702 = vmatpush1.msra.mxu0 0.0
    %1703 = vmatprep.subr.mxu0 0.0
    %1704 = vmatpush1.msra.mxu0 0.0
    %1705 = vmatprep.subr.mxu0 0.0
    %1706 = vmatpush1.msra.mxu0 0.0
    %1707 = vmatprep.subr.mxu0 0.0
    %1708 = vmatpush1.msra.mxu0 0.0
    %1709 = vmatprep.subr.mxu0 0.0
    %1710 = vmatpush1.msra.mxu0 0.0
    %1711 = vmatprep.subr.mxu0 0.0
    %1712 = vmatpush1.msra.mxu0 0.0
    %1713 = vmatprep.subr.mxu0 0.0
    %1714 = vmatpush1.msra.mxu0 0.0
    %1715 = vmatprep.subr.mxu0 0.0
    %1716 = vmatpush1.msra.mxu0 0.0
    %1717 = vmatprep.subr.mxu0 0.0
    %1718 = vmatpush1.msra.mxu0 0.0
    %1719 = vmatprep.subr.mxu0 0.0
    %1720 = vmatpush1.msra.mxu0 0.0
    %1721 = vmatprep.subr.mxu0 0.0
    %1722 = vmatpush1.msra.mxu0 0.0
    %1723 = vmatprep.subr.mxu0 0.0
    %1724 = vmatpush1.msra.mxu0 0.0
    %1725 = vmatprep.subr.mxu0 0.0
    %1726 = vmatpush1.msra.mxu0 0.0
    %1727 = vmatprep.subr.mxu0 0.0
    %1728 = vmatpush1.msra.mxu0 0.0
    %1729 = vmatprep.subr.mxu0 0.0
    %1730 = vmatpush1.msra.mxu0 0.0
    %1731 = vmatprep.subr.mxu0 0.0
    %1732 = vmatpush1.msra.mxu0 0.0
    %1733 = vmatprep.subr.mxu0 0.0
    %1734 = vmatpush1.msra.mxu0 0.0
    %1735 = vmatprep.subr.mxu0 0.0
    %1736 = vmatpush1.msra.mxu0 0.0
    %1737 = vmatprep.subr.mxu0 0.0
    %1738 = vmatpush1.msra.mxu0 0.0
    %1739 = vmatprep.subr.mxu0 0.0
    %1740 = vmatpush1.msra.mxu0 0.0
    %1741 = vmatprep.subr.mxu0 0.0
    %1742 = vmatpush1.msra.mxu0 0.0
    %1743 = vmatprep.mubr.f32.mxu0 0.0
    %1744 = vmatmul.mubr.f32.gmra.mrb[0].mxu0 %v1677
    %v1745 = vpop.f32.mrb[0].mxu0
    %v1746 = vadd.f32 0.0, %v1745
    %v1747 = vpop.f32.mrb[0].mxu0
    %1748 = vdwg.mxu0
    %v1750 = vsel %vm728, %v1675, 0
    %1752 = vmatprep.subr.mxu0 0.0
    %1753 = vmatpush1.msra.mxu0 %v733
    %1754 = vmatprep.subr.mxu0 0.0
    %1755 = vmatpush1.msra.mxu0 0.0
    %1756 = vmatprep.subr.mxu0 0.0
    %1757 = vmatpush1.msra.mxu0 0.0
    %1758 = vmatprep.subr.mxu0 0.0
    %1759 = vmatpush1.msra.mxu0 0.0
    %1760 = vmatprep.subr.mxu0 0.0
    %1761 = vmatpush1.msra.mxu0 0.0
    %1762 = vmatprep.subr.mxu0 0.0
    %1763 = vmatpush1.msra.mxu0 0.0
    %1764 = vmatprep.subr.mxu0 0.0
    %1765 = vmatpush1.msra.mxu0 0.0
    %1766 = vmatprep.subr.mxu0 0.0
    %1767 = vmatpush1.msra.mxu0 0.0
    %1768 = vmatprep.subr.mxu0 0.0
    %1769 = vmatpush1.msra.mxu0 0.0
    %1770 = vmatprep.subr.mxu0 0.0
    %1771 = vmatpush1.msra.mxu0 0.0
    %1772 = vmatprep.subr.mxu0 0.0
    %1773 = vmatpush1.msra.mxu0 0.0
    %1774 = vmatprep.subr.mxu0 0.0
    %1775 = vmatpush1.msra.mxu0 0.0
    %1776 = vmatprep.subr.mxu0 0.0
    %1777 = vmatpush1.msra.mxu0 0.0
    %1778 = vmatprep.subr.mxu0 0.0
    %1779 = vmatpush1.msra.mxu0 0.0
    %1780 = vmatprep.subr.mxu0 0.0
    %1781 = vmatpush1.msra.mxu0 0.0
    %1782 = vmatprep.subr.mxu0 0.0
    %1783 = vmatpush1.msra.mxu0 0.0
    %1784 = vmatprep.subr.mxu0 0.0
    %1785 = vmatpush1.msra.mxu0 0.0
    %1786 = vmatprep.subr.mxu0 0.0
    %1787 = vmatpush1.msra.mxu0 0.0
    %1788 = vmatprep.subr.mxu0 0.0
    %1789 = vmatpush1.msra.mxu0 0.0
    %1790 = vmatprep.subr.mxu0 0.0
    %1791 = vmatpush1.msra.mxu0 0.0
    %1792 = vmatprep.subr.mxu0 0.0
    %1793 = vmatpush1.msra.mxu0 0.0
    %1794 = vmatprep.subr.mxu0 0.0
    %1795 = vmatpush1.msra.mxu0 0.0
    %1796 = vmatprep.subr.mxu0 0.0
    %1797 = vmatpush1.msra.mxu0 0.0
    %1798 = vmatprep.subr.mxu0 0.0
    %1799 = vmatpush1.msra.mxu0 0.0
    %1800 = vmatprep.subr.mxu0 0.0
    %1801 = vmatpush1.msra.mxu0 0.0
    %1802 = vmatprep.subr.mxu0 0.0
    %1803 = vmatpush1.msra.mxu0 0.0
    %1804 = vmatprep.subr.mxu0 0.0
    %1805 = vmatpush1.msra.mxu0 0.0
    %1806 = vmatprep.subr.mxu0 0.0
    %1807 = vmatpush1.msra.mxu0 0.0
    %1808 = vmatprep.subr.mxu0 0.0
    %1809 = vmatpush1.msra.mxu0 0.0
    %1810 = vmatprep.subr.mxu0 0.0
    %1811 = vmatpush1.msra.mxu0 0.0
    %1812 = vmatprep.subr.mxu0 0.0
    %1813 = vmatpush1.msra.mxu0 0.0
    %1814 = vmatprep.subr.mxu0 0.0
    %1815 = vmatpush1.msra.mxu0 0.0
    %1816 = vmatprep.mubr.f32.mxu0 0.0
    %1817 = vmatmul.mubr.f32.gmra.mrb[0].mxu0 %v1750
    %v1818 = vpop.f32.mrb[0].mxu0
    %v1819 = vadd.f32 0.0, %v1818
    %v1820 = vpop.f32.mrb[0].mxu0
    %1821 = vdwg.mxu0
    %v1822 = vmul.f32 %v1204, %v1746
    %v1823 = vadd.f32 %v1822, %v1819
    %v1824 = vmin.f32 %v1823, 20.0
    %v1825 = vmul.f32 %v1824, 1.442695
    %v1826 = vpow.pop %v1825
    %v1827 = vadd.f32 %v1826, 1.0
    %v1828 = vmul.f32 %v1827, %v1827
    %v1829 = vsub.f32 %v1828, 1.0
    %v1830 = vmul.f32 %v1823, %v1829
    %v1831 = vadd.f32 %v1828, 1.0
    %v1832 = vrcp.pop %v1831
    %v1833 = vmul.f32 %v1830, %v1832
    %vm1834 = vcmp.gt.f32.partialorder %v1823, 20.0
    %v1835 = vsel %vm1834, %v1823, %v1833
    %v1836 = vld [vmem:[%s11] sm:$0xf]
    %1837 = vset.pattern.permute.xlu0 4
    %1838 = vperm.xlu0 %1837, %v50
    %v1839 = vpop.permute.xlu0 %1838
    %v1842 = vsel %vm88, %v1836, 0
    %1844 = vmatprep.subr.bf16.mxu0 0
    %1845 = vmatpush1.bf16.msra.mxu0 %v94
    %1846 = vmatprep.subr.bf16.mxu0 0
    %1847 = vmatpush1.bf16.msra.mxu0 0
    %1848 = vmatprep.subr.bf16.mxu0 0
    %1849 = vmatpush1.bf16.msra.mxu0 0
    %1850 = vmatprep.subr.bf16.mxu0 0
    %1851 = vmatpush1.bf16.msra.mxu0 0
    %1852 = vmatprep.subr.bf16.mxu0 0
    %1853 = vmatpush1.bf16.msra.mxu0 0
    %1854 = vmatprep.subr.bf16.mxu0 0
    %1855 = vmatpush1.bf16.msra.mxu0 0
    %1856 = vmatprep.subr.bf16.mxu0 0
    %1857 = vmatpush1.bf16.msra.mxu0 0
    %1858 = vmatprep.subr.bf16.mxu0 0
    %1859 = vmatpush1.bf16.msra.mxu0 0
    %1860 = vmatprep.subr.bf16.mxu0 0
    %1861 = vmatpush1.bf16.msra.mxu0 0
    %1862 = vmatprep.subr.bf16.mxu0 0
    %1863 = vmatpush1.bf16.msra.mxu0 0
    %1864 = vmatprep.subr.bf16.mxu0 0
    %1865 = vmatpush1.bf16.msra.mxu0 0
    %1866 = vmatprep.subr.bf16.mxu0 0
    %1867 = vmatpush1.bf16.msra.mxu0 0
    %1868 = vmatprep.subr.bf16.mxu0 0
    %1869 = vmatpush1.bf16.msra.mxu0 0
    %1870 = vmatprep.subr.bf16.mxu0 0
    %1871 = vmatpush1.bf16.msra.mxu0 0
    %1872 = vmatprep.subr.bf16.mxu0 0
    %1873 = vmatpush1.bf16.msra.mxu0 0
    %1874 = vmatprep.subr.bf16.mxu0 0
    %1875 = vmatpush1.bf16.msra.mxu0 0
    %1876 = vmatprep.mubr.bf16.mxu0 0
    %1877 = vmatmul.mubr.bf16.gmra.mrb[0].mxu0 %v1842
    %v1878 = vpop.f32.mrb[0].mxu0
    %v1879 = vadd.f32 %v1839, %v1878
    %v1880 = vpop.f32.mrb[0].mxu0
    %v1881 = vpop.f32.mrb[0].mxu0
    %v1882 = vpop.f32.mrb[0].mxu0
    %1883 = vdwg.mxu0
    %v1884 = vadd.f32 %v1835, %v1879
    %1885 = vst.msk [vmem:[#allocation2] sm:$0xff] %vm243, %v1884
    // Predicated region
    $region50: #{tpu_custom_call.1} parent=1 // pred_check
      _
    $region51: #{tpu_custom_call.1} parent=1 // pred_check_branch
      %1887 = sbr.rel (0) target = $region53
    $region52: #{tpu_custom_call.1} parent=1 // pred_region
      %s1889 = ssub.s32 128, 128
      %1890 = vsyncadd [#allocation3], %s1889
      %s1892 = sshll.u32 [#allocation2], 4
      %s1893 = int_to_ptr.vmem [resolvable:$true] %s1892
      %1895 = dma.vmem_to_hbm [thread:$0]  %s1893, 128, %s12, [#allocation3]
    $region53: #{tpu_custom_call.1} parent=1 // pred_fallthru
      _
    // Predicated region
    $region54: #{tpu_custom_call.1} parent=1 // pred_check
      _
    $region55: #{tpu_custom_call.1} parent=1 // pred_check_branch
      %1897 = sbr.rel (0) target = $region57
    $region56: #{tpu_custom_call.1} parent=1 // pred_region
      %1898 = dma.done [#allocation3], 128
    $region57: #{tpu_custom_call.1} parent=1 // pred_fallthru
      _
    %1899 = vsyncpa [#allocation3], 1

</llo_original>
